<compile_context>
chip_gen: v5e
topology: v5e:2x2
jax: 0.10.0
libtpu: 0.0.40
codegen_flags: <defaults>
</compile_context>

<pallas_src>
from functools import partial
from math import prod

import jax
import jax.numpy as jnp
from jax import lax
from jax.experimental import pallas as pl
from jax.experimental.pallas import tpu as pltpu


def _round_up(x, m):
    return (x + m - 1) // m * m


def _unpack_grid_kernel(x_ref, o_ref, *, size, hw, chunk_rows, n_chunks):
    """x_ref: (block, size, hw) -> o_ref: (block, hw*size).

    out[r, p*size + s] = x[r, s, p]  (per-row lane interleave).
    """
    out_w = hw * size

    def interleave_rows(rows, nrows):
        x3 = x_ref[rows, :, :]                      # (nrows, size, hw) load
        y = jnp.swapaxes(x3, 1, 2)                  # (nrows, hw, size)  XLU
        o_ref[rows, :] = y.reshape(nrows, out_w)    # full-width lane-dense store

    if n_chunks == 1:
        interleave_rows(slice(None), x_ref.shape[0])
    else:
        def body(c, carry):
            r0 = pl.multiple_of(c * chunk_rows, chunk_rows)
            interleave_rows(pl.ds(r0, chunk_rows), chunk_rows)
            return carry

        # Fully unroll short loops (LLO scheduling visibility); keep long ones
        # rolled so live ranges stay bounded inside the 64-vreg file.
        lax.fori_loop(0, n_chunks, body, 0, unroll=n_chunks <= 8)


def _plan_tiles(n_rows, size, hw, itemsize):
    """Pick (block_rows, chunk_rows) for the flat (N, size, HW) problem."""
    CHUNK_DATA_BYTES = 32 << 10   # live data per in-kernel chunk
    MAX_CHUNKS = 64               # in-kernel loop budget per block
    VMEM_BUDGET = 24 << 20        # headroom under the 32 MiB scoped limit

    row_bytes = size * hw * itemsize
    # Per-row VMEM *buffer* footprint, including (sublane, lane) padding of the
    # (size, hw) input tile and lane padding of the output row.
    sublane = max(8, 32 // max(itemsize, 1))          # 8 f32 / 16 bf16 / 32 i8
    in_row = _round_up(size, sublane) * _round_up(hw, 128) * itemsize
    out_row = _round_up(size * hw, 128) * itemsize
    buf_row = 2 * (in_row + out_row)                  # double-buffered in + out

    if n_rows <= 8:
        return n_rows, n_rows                         # single tiny block

    chunk = max(8, min(n_rows, CHUNK_DATA_BYTES // max(row_bytes, 1)) // 8 * 8)
    by_vmem = max(1, VMEM_BUDGET // max(chunk * buf_row, 1))
    block = chunk * max(1, min(MAX_CHUNKS, by_vmem))
    # Keep at least two grid steps when the data allows it, so the 'parallel'
    # axis can be split across the two TensorCores on v7x (no-op on v5e/v6e).
    if block >= n_rows and n_rows >= 2 * chunk:
        block = _round_up(pl.cdiv(n_rows, 2), chunk)
    block = min(block, max(chunk, n_rows // chunk * chunk))
    return block, chunk


def unpack_grid(x, size, *, block_rows=None, chunk_rows=None):
    """Pallas implementation of UnpackGrid.forward for (..., C, H, W) input."""
    *lead, C, H, W = x.shape
    if C % size != 0:
        raise ValueError(f"channel dim {C} not divisible by size {size}")
    G = C // size
    if size == 1:
        # movedim of a singleton axis: pure metadata reshape, no kernel needed.
        return x.reshape(*lead, G, H, W, 1)

    HW = H * W
    N = (prod(lead) if lead else 1) * G
    itemsize = jnp.dtype(x.dtype).itemsize

    auto_block, auto_chunk = _plan_tiles(N, size, HW, itemsize)
    if chunk_rows is None:
        chunk_rows = auto_chunk
    if block_rows is None:
        block_rows = auto_block
    if block_rows % chunk_rows != 0:
        raise ValueError("block_rows must be a multiple of chunk_rows")
    if block_rows != N and block_rows % 8 != 0:
        raise ValueError("block_rows must be a multiple of 8 or equal to N")

    n_chunks = block_rows // chunk_rows
    grid_n = pl.cdiv(N, block_rows)

    x_flat = x.reshape(N, size, HW)  # free row-major metadata reshape

    kernel = partial(_unpack_grid_kernel, size=size, hw=HW,
                     chunk_rows=chunk_rows, n_chunks=n_chunks)

    out_flat = pl.pallas_call(
        kernel,
        out_shape=jax.ShapeDtypeStruct((N, HW * size), x.dtype),
        grid_spec=pltpu.PrefetchScalarGridSpec(
            num_scalar_prefetch=0,
            grid=(grid_n,),
            in_specs=[
                # Last two block dims equal the full (size, HW) extents.
                pl.BlockSpec((block_rows, size, HW), lambda i: (i, 0, 0)),
            ],
            out_specs=pl.BlockSpec(
                # Lane-dense output block; block_rows is a multiple of 8 or N.
                (block_rows, HW * size), lambda i: (i, 0)
            ),
        ),
        compiler_params=pltpu.CompilerParams(
            dimension_semantics=("parallel",),
            # 32 MiB scoped limit is safe on v5e/v6e (128 MiB VMEM) and v7x
            # (64 MiB); the planner keeps the padded, double-buffered working
            # set under ~24 MiB.  On v5e/v6e this could be raised further.
            vmem_limit_bytes=32 * 1024 * 1024,
        ),
        cost_estimate=pl.CostEstimate(
            flops=0,
            transcendentals=0,
            bytes_accessed=2 * N * size * HW * itemsize,
        ),
    )(x_flat)

    # Free row-major metadata reshape: (N, HW*size) -> (..., G, H, W, size).
    return out_flat.reshape(*lead, G, H, W, size)


def unpack_grid_ref(x, size):
    """Pure-JAX reference matching the PyTorch module exactly."""
    *lead, C, H, W = x.shape
    r = x.reshape(*lead, C // size, size, H, W)
    return jnp.moveaxis(r, -3, -1)


if __name__ == "__main__":
    key = jax.random.PRNGKey(0)
    k1, k2, k3 = jax.random.split(key, 3)

    # 1) Module-sized case: (B, C, H, W) = (2, 4, 16, 16), size = 2.
    #    N = 4 rows -> single block, straight-line kernel path.
    x1 = jax.random.normal(k1, (2, 4, 16, 16), dtype=jnp.float32)
    o1 = jax.block_until_ready(unpack_grid(x1, 2))
    assert o1.shape == (2, 2, 16, 16, 2), o1.shape
    assert bool(jnp.array_equal(o1, unpack_grid_ref(x1, 2))), "mismatch (test 1)"

    # 1b) size == 1 bypass (pure reshape, no kernel).
    o1b = jax.block_until_ready(unpack_grid(x1, 1))
    assert bool(jnp.array_equal(o1b, unpack_grid_ref(x1, 1))), "mismatch (size=1)"

    # 2) Ragged N with multiple grid steps: N = 9 rows -> 8-row blocks, grid=2,
    #    last block partially valid (exercises masked edge handling).
    x2 = jax.random.normal(k2, (3, 6, 16, 16), dtype=jnp.float32)
    o2 = jax.block_until_ready(unpack_grid(x2, 2))
    assert o2.shape == (3, 3, 16, 16, 2), o2.shape
    assert bool(jnp.array_equal(o2, unpack_grid_ref(x2, 2))), "mismatch (test 2)"

    # 3) Multi-chunk in-kernel loop and size = 4: N = 16 rows, one 16-row block
    #    split into two 8-row chunks inside the kernel.
    x3 = jax.random.normal(k3, (2, 32, 16, 16), dtype=jnp.float32)
    o3 = jax.block_until_ready(unpack_grid(x3, 4, block_rows=16, chunk_rows=8))
    assert o3.shape == (2, 8, 16, 16, 4), o3.shape
    assert bool(jnp.array_equal(o3, unpack_grid_ref(x3, 4))), "mismatch (test 3)"

    print("KERNEL_OK")
</pallas_src>

<mosaic_0001>
module attributes {stable_mosaic.version = 11 : i64} {
  func.func @_unpack_grid_kernel(%arg0: i32, %arg1: memref<4x2x256xf32, #tpu.memory_space<vmem>>, %arg2: memref<4x512xf32, #tpu.memory_space<vmem>>) attributes {dimension_semantics = [#tpu.dimension_semantics<parallel>], iteration_bounds = array<i64: 1>, scalar_prefetch = 0 : i64, scratch_operands = 0 : i64, tpu.core_type = #tpu.core_type<tc>, window_params = [{transform_indices = @transform_0, window_bounds = array<i64: 4, 2, 256>}, {transform_indices = @transform_1, window_bounds = array<i64: 4, 512>}]} {
    %c0 = arith.constant 0 : index
    %c0_0 = arith.constant 0 : index
    %c0_1 = arith.constant 0 : index
    %0 = vector.load %arg1[%c0, %c0_0, %c0_1] : memref<4x2x256xf32, #tpu.memory_space<vmem>>, vector<4x2x256xf32>
    %1 = tpu.transpose %0, [0, 2, 1] : vector<4x2x256xf32> -> vector<4x256x2xf32>
    %2 = vector.shape_cast %1 : vector<4x256x2xf32> to vector<4x512xf32>
    %c0_2 = arith.constant 0 : index
    %c0_3 = arith.constant 0 : index
    %3 = vector.load %arg2[%c0_2, %c0_3] : memref<4x512xf32, #tpu.memory_space<vmem>>, vector<4x512xf32>
    tpu.vector_store %arg2[%c0_2, %c0_3], %2 {strides = array<i32>} : memref<4x512xf32, #tpu.memory_space<vmem>>, vector<4x512xf32>,
    return
  }
  func.func @transform_0(%arg0: i32) -> (i32, i32, i32) {
    %c0_i32 = arith.constant 0 : i32
    %c0_i32_0 = arith.constant 0 : i32
    %c0_i32_1 = arith.constant 0 : i32
    return %arg0, %c0_i32, %c0_i32_0 : i32, i32, i32
  }
  func.func @transform_1(%arg0: i32) -> (i32, i32) {
    %c0_i32 = arith.constant 0 : i32
    %c0_i32_0 = arith.constant 0 : i32
    return %arg0, %c0_i32 : i32, i32
  }
}

</mosaic_0001>

<llo_original>
// kernel: tpu_custom_call.1
$region0: #{tpu_custom_call.1}
  #allocation0 [shape = 'u32[]', space=smem, size = 0x4, offset = 0x4, fixed_abs, tag = 'smem constant byte address 0x4 - core index']
  #allocation1 [shape = 'u32[72,128]{1,0:T(1,128)}', space=vmem, size = 0x9000, scoped, tag = 'internal scratch']
  %s0 = inlined_call_operand.hbm [shape: f32[4,2,256], index: 0, kind: input, shape index: {}]
  %s1 = inlined_call_operand.hbm [shape: f32[4,512], index: 1, kind: output, shape index: {}]
  %s2 = sld [smem:[#allocation0]]
  $region18: #{tpu_custom_call.1} parent=0
    _
  %s4 = ssub.s32 1, %s2
  %s5 = scalar_select 0, %s4, %s2
  $region1: #{tpu_custom_call.1} parent=0
    #allocation2 [shape = 'u8[8192]{0}', space=vmem, size = 0x2000, scoped, tag = 'input window, operand 0, single buffered']
    #allocation3 [shape = 's32[1]{0}', space=sflag, size = 0x4, scoped, tag = 'scoped memory for tpu_custom_call.1']
    #allocation4 [shape = 's32[1]{0}', space=sflag, size = 0x4, scoped, tag = 'scoped memory for tpu_custom_call.1']
    #allocation5 [shape = 'u8[8192]{0}', space=vmem, size = 0x2000, scoped, tag = 'output window, operand 0, single buffered']
    %6 = vsyncpa [#allocation3], 0
    %7 = vsyncpa [#allocation4], 0
    // Predicated region
    $region2: #{tpu_custom_call.1} parent=1 // pred_check
      _
    $region3: #{tpu_custom_call.1} parent=1 // pred_check_branch
      %9 = sbr.rel (0) target = $region5
    $region4: #{tpu_custom_call.1} parent=1 // pred_region
      %11 = vsyncadd [#allocation3], 0
      %s12 = sshll.u32 %s0, 4
      %s13 = int_to_ptr.hbm [resolvable:$true] %s12
      %s14 = sshll.u32 [#allocation2], 4
      %s15 = int_to_ptr.vmem [resolvable:$true] %s14
      %20 = dma.hbm_to_vmem [thread:$0]  %s13, 256, %s15, [#allocation3], 64, 64, 4
    $region5: #{tpu_custom_call.1} parent=1 // pred_fallthru
      _
    // Predicated region
    $region6: #{tpu_custom_call.1} parent=1 // pred_check
      _
    $region7: #{tpu_custom_call.1} parent=1 // pred_check_branch
      %22 = sbr.rel (0) target = $region9
    $region8: #{tpu_custom_call.1} parent=1 // pred_region
      %24 = dma.done [#allocation3], 256
    $region9: #{tpu_custom_call.1} parent=1 // pred_fallthru
      _
    %v25 = vld [vmem:[#allocation2] sm:$0xf]
    %v26 = vld [vmem:[#allocation2 + $0x4] sm:$0xf]
    %v27 = vld [vmem:[#allocation2 + $0x8] sm:$0xf]
    %v28 = vld [vmem:[#allocation2 + $0xc] sm:$0xf]
    %33 = vst [vmem:[#allocation1] ss:$4 sm:$0xff] %v25
    %v34 = vld.sshfl [vmem:[#allocation1] sm:$0xff pattern:$0x73625140]
    %v35 = vld.sshfl [vmem:[#allocation1 + $0x8] sm:$0xff pattern:$0x73625140]
    %s36 = scalar_lea.vmem [#allocation1], 32
    %37 = vst [vmem:[%s36] ss:$4 sm:$0xff] %v26
    %v38 = vld.sshfl [vmem:[#allocation1 + $0x20] sm:$0xff pattern:$0x73625140]
    %v39 = vld.sshfl [vmem:[#allocation1 + $0x28] sm:$0xff pattern:$0x73625140]
    %40 = vst [vmem:[#allocation1] ss:$4 sm:$0xff] %v27
    %v41 = vld.sshfl [vmem:[#allocation1] sm:$0xff pattern:$0x73625140]
    %v42 = vld.sshfl [vmem:[#allocation1 + $0x8] sm:$0xff pattern:$0x73625140]
    %43 = vst [vmem:[%s36] ss:$4 sm:$0xff] %v28
    %v44 = vld.sshfl [vmem:[#allocation1 + $0x20] sm:$0xff pattern:$0x73625140]
    %v45 = vld.sshfl [vmem:[#allocation1 + $0x28] sm:$0xff pattern:$0x73625140]
    %54 = vxpose.xlu0.b32.start [1/16] %v34, 128
    %55 = vxpose.xlu0.b32.cont [2/16] 0.0, 128
    %56 = vxpose.xlu0.b32.cont [3/16] 0.0, 128
    %57 = vxpose.xlu0.b32.cont [4/16] 0.0, 128
    %58 = vxpose.xlu0.b32.cont [5/16] 0.0, 128
    %59 = vxpose.xlu0.b32.cont [6/16] 0.0, 128
    %60 = vxpose.xlu0.b32.cont [7/16] 0.0, 128
    %61 = vxpose.xlu0.b32.cont [8/16] 0.0, 128
    %62 = vxpose.xlu0.b32.cont [9/16] 0.0, 128
    %63 = vxpose.xlu0.b32.cont [10/16] 0.0, 128
    %64 = vxpose.xlu0.b32.cont [11/16] 0.0, 128
    %65 = vxpose.xlu0.b32.cont [12/16] 0.0, 128
    %66 = vxpose.xlu0.b32.cont [13/16] 0.0, 128
    %67 = vxpose.xlu0.b32.cont [14/16] 0.0, 128
    %68 = vxpose.xlu0.b32.cont [15/16] 0.0, 128
    %69 = vxpose.xlu0.b32.end [16/16] 0.0, 128
    %v70 = vpop.trf.xlu0
    %v71 = vpop.trf.xlu0
    %v72 = vpop.trf.xlu0
    %v73 = vpop.trf.xlu0
    %v74 = vpop.trf.xlu0
    %v75 = vpop.trf.xlu0
    %v76 = vpop.trf.xlu0
    %v77 = vpop.trf.xlu0
    %v78 = vpop.trf.xlu0
    %v79 = vpop.trf.xlu0
    %v80 = vpop.trf.xlu0
    %v81 = vpop.trf.xlu0
    %v82 = vpop.trf.xlu0
    %v83 = vpop.trf.xlu0
    %v84 = vpop.trf.xlu0
    %v85 = vpop.trf.xlu0
    %86 = vxpose.xlu0.b32.start [1/16] %v35, 128
    %87 = vxpose.xlu0.b32.cont [2/16] 0.0, 128
    %88 = vxpose.xlu0.b32.cont [3/16] 0.0, 128
    %89 = vxpose.xlu0.b32.cont [4/16] 0.0, 128
    %90 = vxpose.xlu0.b32.cont [5/16] 0.0, 128
    %91 = vxpose.xlu0.b32.cont [6/16] 0.0, 128
    %92 = vxpose.xlu0.b32.cont [7/16] 0.0, 128
    %93 = vxpose.xlu0.b32.cont [8/16] 0.0, 128
    %94 = vxpose.xlu0.b32.cont [9/16] 0.0, 128
    %95 = vxpose.xlu0.b32.cont [10/16] 0.0, 128
    %96 = vxpose.xlu0.b32.cont [11/16] 0.0, 128
    %97 = vxpose.xlu0.b32.cont [12/16] 0.0, 128
    %98 = vxpose.xlu0.b32.cont [13/16] 0.0, 128
    %99 = vxpose.xlu0.b32.cont [14/16] 0.0, 128
    %100 = vxpose.xlu0.b32.cont [15/16] 0.0, 128
    %101 = vxpose.xlu0.b32.end [16/16] 0.0, 128
    %v102 = vpop.trf.xlu0
    %v103 = vpop.trf.xlu0
    %v104 = vpop.trf.xlu0
    %v105 = vpop.trf.xlu0
    %v106 = vpop.trf.xlu0
    %v107 = vpop.trf.xlu0
    %v108 = vpop.trf.xlu0
    %v109 = vpop.trf.xlu0
    %v110 = vpop.trf.xlu0
    %v111 = vpop.trf.xlu0
    %v112 = vpop.trf.xlu0
    %v113 = vpop.trf.xlu0
    %v114 = vpop.trf.xlu0
    %v115 = vpop.trf.xlu0
    %v116 = vpop.trf.xlu0
    %v117 = vpop.trf.xlu0
    %118 = vxpose.xlu0.b32.start [1/16] %v38, 128
    %119 = vxpose.xlu0.b32.cont [2/16] 0.0, 128
    %120 = vxpose.xlu0.b32.cont [3/16] 0.0, 128
    %121 = vxpose.xlu0.b32.cont [4/16] 0.0, 128
    %122 = vxpose.xlu0.b32.cont [5/16] 0.0, 128
    %123 = vxpose.xlu0.b32.cont [6/16] 0.0, 128
    %124 = vxpose.xlu0.b32.cont [7/16] 0.0, 128
    %125 = vxpose.xlu0.b32.cont [8/16] 0.0, 128
    %126 = vxpose.xlu0.b32.cont [9/16] 0.0, 128
    %127 = vxpose.xlu0.b32.cont [10/16] 0.0, 128
    %128 = vxpose.xlu0.b32.cont [11/16] 0.0, 128
    %129 = vxpose.xlu0.b32.cont [12/16] 0.0, 128
    %130 = vxpose.xlu0.b32.cont [13/16] 0.0, 128
    %131 = vxpose.xlu0.b32.cont [14/16] 0.0, 128
    %132 = vxpose.xlu0.b32.cont [15/16] 0.0, 128
    %133 = vxpose.xlu0.b32.end [16/16] 0.0, 128
    %v134 = vpop.trf.xlu0
    %v135 = vpop.trf.xlu0
    %v136 = vpop.trf.xlu0
    %v137 = vpop.trf.xlu0
    %v138 = vpop.trf.xlu0
    %v139 = vpop.trf.xlu0
    %v140 = vpop.trf.xlu0
    %v141 = vpop.trf.xlu0
    %v142 = vpop.trf.xlu0
    %v143 = vpop.trf.xlu0
    %v144 = vpop.trf.xlu0
    %v145 = vpop.trf.xlu0
    %v146 = vpop.trf.xlu0
    %v147 = vpop.trf.xlu0
    %v148 = vpop.trf.xlu0
    %v149 = vpop.trf.xlu0
    %150 = vxpose.xlu0.b32.start [1/16] %v39, 128
    %151 = vxpose.xlu0.b32.cont [2/16] 0.0, 128
    %152 = vxpose.xlu0.b32.cont [3/16] 0.0, 128
    %153 = vxpose.xlu0.b32.cont [4/16] 0.0, 128
    %154 = vxpose.xlu0.b32.cont [5/16] 0.0, 128
    %155 = vxpose.xlu0.b32.cont [6/16] 0.0, 128
    %156 = vxpose.xlu0.b32.cont [7/16] 0.0, 128
    %157 = vxpose.xlu0.b32.cont [8/16] 0.0, 128
    %158 = vxpose.xlu0.b32.cont [9/16] 0.0, 128
    %159 = vxpose.xlu0.b32.cont [10/16] 0.0, 128
    %160 = vxpose.xlu0.b32.cont [11/16] 0.0, 128
    %161 = vxpose.xlu0.b32.cont [12/16] 0.0, 128
    %162 = vxpose.xlu0.b32.cont [13/16] 0.0, 128
    %163 = vxpose.xlu0.b32.cont [14/16] 0.0, 128
    %164 = vxpose.xlu0.b32.cont [15/16] 0.0, 128
    %165 = vxpose.xlu0.b32.end [16/16] 0.0, 128
    %v166 = vpop.trf.xlu0
    %v167 = vpop.trf.xlu0
    %v168 = vpop.trf.xlu0
    %v169 = vpop.trf.xlu0
    %v170 = vpop.trf.xlu0
    %v171 = vpop.trf.xlu0
    %v172 = vpop.trf.xlu0
    %v173 = vpop.trf.xlu0
    %v174 = vpop.trf.xlu0
    %v175 = vpop.trf.xlu0
    %v176 = vpop.trf.xlu0
    %v177 = vpop.trf.xlu0
    %v178 = vpop.trf.xlu0
    %v179 = vpop.trf.xlu0
    %v180 = vpop.trf.xlu0
    %v181 = vpop.trf.xlu0
    %182 = vxpose.xlu0.b32.start [1/16] %v41, 128
    %183 = vxpose.xlu0.b32.cont [2/16] 0.0, 128
    %184 = vxpose.xlu0.b32.cont [3/16] 0.0, 128
    %185 = vxpose.xlu0.b32.cont [4/16] 0.0, 128
    %186 = vxpose.xlu0.b32.cont [5/16] 0.0, 128
    %187 = vxpose.xlu0.b32.cont [6/16] 0.0, 128
    %188 = vxpose.xlu0.b32.cont [7/16] 0.0, 128
    %189 = vxpose.xlu0.b32.cont [8/16] 0.0, 128
    %190 = vxpose.xlu0.b32.cont [9/16] 0.0, 128
    %191 = vxpose.xlu0.b32.cont [10/16] 0.0, 128
    %192 = vxpose.xlu0.b32.cont [11/16] 0.0, 128
    %193 = vxpose.xlu0.b32.cont [12/16] 0.0, 128
    %194 = vxpose.xlu0.b32.cont [13/16] 0.0, 128
    %195 = vxpose.xlu0.b32.cont [14/16] 0.0, 128
    %196 = vxpose.xlu0.b32.cont [15/16] 0.0, 128
    %197 = vxpose.xlu0.b32.end [16/16] 0.0, 128
    %v198 = vpop.trf.xlu0
    %v199 = vpop.trf.xlu0
    %v200 = vpop.trf.xlu0
    %v201 = vpop.trf.xlu0
    %v202 = vpop.trf.xlu0
    %v203 = vpop.trf.xlu0
    %v204 = vpop.trf.xlu0
    %v205 = vpop.trf.xlu0
    %v206 = vpop.trf.xlu0
    %v207 = vpop.trf.xlu0
    %v208 = vpop.trf.xlu0
    %v209 = vpop.trf.xlu0
    %v210 = vpop.trf.xlu0
    %v211 = vpop.trf.xlu0
    %v212 = vpop.trf.xlu0
    %v213 = vpop.trf.xlu0
    %214 = vxpose.xlu0.b32.start [1/16] %v42, 128
    %215 = vxpose.xlu0.b32.cont [2/16] 0.0, 128
    %216 = vxpose.xlu0.b32.cont [3/16] 0.0, 128
    %217 = vxpose.xlu0.b32.cont [4/16] 0.0, 128
    %218 = vxpose.xlu0.b32.cont [5/16] 0.0, 128
    %219 = vxpose.xlu0.b32.cont [6/16] 0.0, 128
    %220 = vxpose.xlu0.b32.cont [7/16] 0.0, 128
    %221 = vxpose.xlu0.b32.cont [8/16] 0.0, 128
    %222 = vxpose.xlu0.b32.cont [9/16] 0.0, 128
    %223 = vxpose.xlu0.b32.cont [10/16] 0.0, 128
    %224 = vxpose.xlu0.b32.cont [11/16] 0.0, 128
    %225 = vxpose.xlu0.b32.cont [12/16] 0.0, 128
    %226 = vxpose.xlu0.b32.cont [13/16] 0.0, 128
    %227 = vxpose.xlu0.b32.cont [14/16] 0.0, 128
    %228 = vxpose.xlu0.b32.cont [15/16] 0.0, 128
    %229 = vxpose.xlu0.b32.end [16/16] 0.0, 128
    %v230 = vpop.trf.xlu0
    %v231 = vpop.trf.xlu0
    %v232 = vpop.trf.xlu0
    %v233 = vpop.trf.xlu0
    %v234 = vpop.trf.xlu0
    %v235 = vpop.trf.xlu0
    %v236 = vpop.trf.xlu0
    %v237 = vpop.trf.xlu0
    %v238 = vpop.trf.xlu0
    %v239 = vpop.trf.xlu0
    %v240 = vpop.trf.xlu0
    %v241 = vpop.trf.xlu0
    %v242 = vpop.trf.xlu0
    %v243 = vpop.trf.xlu0
    %v244 = vpop.trf.xlu0
    %v245 = vpop.trf.xlu0
    %246 = vxpose.xlu0.b32.start [1/16] %v44, 128
    %247 = vxpose.xlu0.b32.cont [2/16] 0.0, 128
    %248 = vxpose.xlu0.b32.cont [3/16] 0.0, 128
    %249 = vxpose.xlu0.b32.cont [4/16] 0.0, 128
    %250 = vxpose.xlu0.b32.cont [5/16] 0.0, 128
    %251 = vxpose.xlu0.b32.cont [6/16] 0.0, 128
    %252 = vxpose.xlu0.b32.cont [7/16] 0.0, 128
    %253 = vxpose.xlu0.b32.cont [8/16] 0.0, 128
    %254 = vxpose.xlu0.b32.cont [9/16] 0.0, 128
    %255 = vxpose.xlu0.b32.cont [10/16] 0.0, 128
    %256 = vxpose.xlu0.b32.cont [11/16] 0.0, 128
    %257 = vxpose.xlu0.b32.cont [12/16] 0.0, 128
    %258 = vxpose.xlu0.b32.cont [13/16] 0.0, 128
    %259 = vxpose.xlu0.b32.cont [14/16] 0.0, 128
    %260 = vxpose.xlu0.b32.cont [15/16] 0.0, 128
    %261 = vxpose.xlu0.b32.end [16/16] 0.0, 128
    %v262 = vpop.trf.xlu0
    %v263 = vpop.trf.xlu0
    %v264 = vpop.trf.xlu0
    %v265 = vpop.trf.xlu0
    %v266 = vpop.trf.xlu0
    %v267 = vpop.trf.xlu0
    %v268 = vpop.trf.xlu0
    %v269 = vpop.trf.xlu0
    %v270 = vpop.trf.xlu0
    %v271 = vpop.trf.xlu0
    %v272 = vpop.trf.xlu0
    %v273 = vpop.trf.xlu0
    %v274 = vpop.trf.xlu0
    %v275 = vpop.trf.xlu0
    %v276 = vpop.trf.xlu0
    %v277 = vpop.trf.xlu0
    %278 = vxpose.xlu0.b32.start [1/16] %v45, 128
    %279 = vxpose.xlu0.b32.cont [2/16] 0.0, 128
    %280 = vxpose.xlu0.b32.cont [3/16] 0.0, 128
    %281 = vxpose.xlu0.b32.cont [4/16] 0.0, 128
    %282 = vxpose.xlu0.b32.cont [5/16] 0.0, 128
    %283 = vxpose.xlu0.b32.cont [6/16] 0.0, 128
    %284 = vxpose.xlu0.b32.cont [7/16] 0.0, 128
    %285 = vxpose.xlu0.b32.cont [8/16] 0.0, 128
    %286 = vxpose.xlu0.b32.cont [9/16] 0.0, 128
    %287 = vxpose.xlu0.b32.cont [10/16] 0.0, 128
    %288 = vxpose.xlu0.b32.cont [11/16] 0.0, 128
    %289 = vxpose.xlu0.b32.cont [12/16] 0.0, 128
    %290 = vxpose.xlu0.b32.cont [13/16] 0.0, 128
    %291 = vxpose.xlu0.b32.cont [14/16] 0.0, 128
    %292 = vxpose.xlu0.b32.cont [15/16] 0.0, 128
    %293 = vxpose.xlu0.b32.end [16/16] 0.0, 128
    %v294 = vpop.trf.xlu0
    %v295 = vpop.trf.xlu0
    %v296 = vpop.trf.xlu0
    %v297 = vpop.trf.xlu0
    %v298 = vpop.trf.xlu0
    %v299 = vpop.trf.xlu0
    %v300 = vpop.trf.xlu0
    %v301 = vpop.trf.xlu0
    %v302 = vpop.trf.xlu0
    %v303 = vpop.trf.xlu0
    %v304 = vpop.trf.xlu0
    %v305 = vpop.trf.xlu0
    %v306 = vpop.trf.xlu0
    %v307 = vpop.trf.xlu0
    %v308 = vpop.trf.xlu0
    %v309 = vpop.trf.xlu0
    %v310 = vrot.slane %v198, 4
    %vm311 = vcmask 1047556
    %v312 = vsel %vm311, %v310, %v70
    %v313 = vrot.slane %v70, 4
    %v314 = vsel %vm311, %v198, %v313
    %v316 = vunpack.c.l.s4 1983009808
    %v317 = vunpack.c.0.s8 %v316
    %v318 = vperm.slane %v312, %v317
    %v320 = vunpack.c.l.s4 1983009808
    %v321 = vunpack.c.0.s8 %v320
    %v322 = vperm.slane %v314, %v321
    %v323 = vrot.slane %v262, 4
    %v324 = vsel %vm311, %v323, %v134
    %v325 = vrot.slane %v134, 4
    %v326 = vsel %vm311, %v262, %v325
    %v328 = vunpack.c.l.s4 1983009808
    %v329 = vunpack.c.0.s8 %v328
    %v330 = vperm.slane %v324, %v329
    %v332 = vunpack.c.l.s4 1983009808
    %v333 = vunpack.c.0.s8 %v332
    %v334 = vperm.slane %v326, %v333
    %v335 = vrot.slane %v330, 4
    %v336 = vsel %vm311, %v335, %v318
    %v337 = vrot.slane %v318, 4
    %v338 = vsel %vm311, %v330, %v337
    %v340 = vunpack.c.l.s4 1934713408
    %v341 = vunpack.c.0.s8 %v340
    %v342 = vperm.slane %v336, %v341
    %v344 = vunpack.c.l.s4 1934713408
    %v345 = vunpack.c.0.s8 %v344
    %v346 = vperm.slane %v338, %v345
    %v347 = vrot.slane %v334, 4
    %v348 = vsel %vm311, %v347, %v322
    %v349 = vrot.slane %v322, 4
    %v350 = vsel %vm311, %v334, %v349
    %v352 = vunpack.c.l.s4 1934713408
    %v353 = vunpack.c.0.s8 %v352
    %v354 = vperm.slane %v348, %v353
    %v356 = vunpack.c.l.s4 1934713408
    %v357 = vunpack.c.0.s8 %v356
    %v358 = vperm.slane %v350, %v357
    %v359 = vrot.slane %v342, 4
    %v360 = vsel %vm311, 0.0, %v359
    %v361 = vrot.slane %v346, 4
    %v362 = vsel %vm311, 0.0, %v361
    %v363 = vrot.slane %v354, 4
    %v364 = vsel %vm311, 0.0, %v363
    %v365 = vrot.slane %v358, 4
    %v366 = vsel %vm311, 0.0, %v365
    %v367 = vrot.slane %v199, 4
    %v368 = vsel %vm311, %v367, %v71
    %v369 = vrot.slane %v71, 4
    %v370 = vsel %vm311, %v199, %v369
    %v372 = vunpack.c.l.s4 1983009808
    %v373 = vunpack.c.0.s8 %v372
    %v374 = vperm.slane %v368, %v373
    %v376 = vunpack.c.l.s4 1983009808
    %v377 = vunpack.c.0.s8 %v376
    %v378 = vperm.slane %v370, %v377
    %v379 = vrot.slane %v263, 4
    %v380 = vsel %vm311, %v379, %v135
    %v381 = vrot.slane %v135, 4
    %v382 = vsel %vm311, %v263, %v381
    %v384 = vunpack.c.l.s4 1983009808
    %v385 = vunpack.c.0.s8 %v384
    %v386 = vperm.slane %v380, %v385
    %v388 = vunpack.c.l.s4 1983009808
    %v389 = vunpack.c.0.s8 %v388
    %v390 = vperm.slane %v382, %v389
    %v391 = vrot.slane %v386, 4
    %v392 = vsel %vm311, %v391, %v374
    %v393 = vrot.slane %v374, 4
    %v394 = vsel %vm311, %v386, %v393
    %v396 = vunpack.c.l.s4 1934713408
    %v397 = vunpack.c.0.s8 %v396
    %v398 = vperm.slane %v392, %v397
    %v400 = vunpack.c.l.s4 1934713408
    %v401 = vunpack.c.0.s8 %v400
    %v402 = vperm.slane %v394, %v401
    %v403 = vrot.slane %v390, 4
    %v404 = vsel %vm311, %v403, %v378
    %v405 = vrot.slane %v378, 4
    %v406 = vsel %vm311, %v390, %v405
    %v408 = vunpack.c.l.s4 1934713408
    %v409 = vunpack.c.0.s8 %v408
    %v410 = vperm.slane %v404, %v409
    %v412 = vunpack.c.l.s4 1934713408
    %v413 = vunpack.c.0.s8 %v412
    %v414 = vperm.slane %v406, %v413
    %v415 = vrot.slane %v398, 4
    %v416 = vsel %vm311, 0.0, %v415
    %v417 = vrot.slane %v402, 4
    %v418 = vsel %vm311, 0.0, %v417
    %v419 = vrot.slane %v410, 4
    %v420 = vsel %vm311, 0.0, %v419
    %v421 = vrot.slane %v414, 4
    %v422 = vsel %vm311, 0.0, %v421
    %v423 = vrot.slane %v200, 4
    %v424 = vsel %vm311, %v423, %v72
    %v425 = vrot.slane %v72, 4
    %v426 = vsel %vm311, %v200, %v425
    %v428 = vunpack.c.l.s4 1983009808
    %v429 = vunpack.c.0.s8 %v428
    %v430 = vperm.slane %v424, %v429
    %v432 = vunpack.c.l.s4 1983009808
    %v433 = vunpack.c.0.s8 %v432
    %v434 = vperm.slane %v426, %v433
    %v435 = vrot.slane %v264, 4
    %v436 = vsel %vm311, %v435, %v136
    %v437 = vrot.slane %v136, 4
    %v438 = vsel %vm311, %v264, %v437
    %v440 = vunpack.c.l.s4 1983009808
    %v441 = vunpack.c.0.s8 %v440
    %v442 = vperm.slane %v436, %v441
    %v444 = vunpack.c.l.s4 1983009808
    %v445 = vunpack.c.0.s8 %v444
    %v446 = vperm.slane %v438, %v445
    %v447 = vrot.slane %v442, 4
    %v448 = vsel %vm311, %v447, %v430
    %v449 = vrot.slane %v430, 4
    %v450 = vsel %vm311, %v442, %v449
    %v452 = vunpack.c.l.s4 1934713408
    %v453 = vunpack.c.0.s8 %v452
    %v454 = vperm.slane %v448, %v453
    %v456 = vunpack.c.l.s4 1934713408
    %v457 = vunpack.c.0.s8 %v456
    %v458 = vperm.slane %v450, %v457
    %v459 = vrot.slane %v446, 4
    %v460 = vsel %vm311, %v459, %v434
    %v461 = vrot.slane %v434, 4
    %v462 = vsel %vm311, %v446, %v461
    %v464 = vunpack.c.l.s4 1934713408
    %v465 = vunpack.c.0.s8 %v464
    %v466 = vperm.slane %v460, %v465
    %v468 = vunpack.c.l.s4 1934713408
    %v469 = vunpack.c.0.s8 %v468
    %v470 = vperm.slane %v462, %v469
    %v471 = vrot.slane %v454, 4
    %v472 = vsel %vm311, 0.0, %v471
    %v473 = vrot.slane %v458, 4
    %v474 = vsel %vm311, 0.0, %v473
    %v475 = vrot.slane %v466, 4
    %v476 = vsel %vm311, 0.0, %v475
    %v477 = vrot.slane %v470, 4
    %v478 = vsel %vm311, 0.0, %v477
    %v479 = vrot.slane %v201, 4
    %v480 = vsel %vm311, %v479, %v73
    %v481 = vrot.slane %v73, 4
    %v482 = vsel %vm311, %v201, %v481
    %v484 = vunpack.c.l.s4 1983009808
    %v485 = vunpack.c.0.s8 %v484
    %v486 = vperm.slane %v480, %v485
    %v488 = vunpack.c.l.s4 1983009808
    %v489 = vunpack.c.0.s8 %v488
    %v490 = vperm.slane %v482, %v489
    %v491 = vrot.slane %v265, 4
    %v492 = vsel %vm311, %v491, %v137
    %v493 = vrot.slane %v137, 4
    %v494 = vsel %vm311, %v265, %v493
    %v496 = vunpack.c.l.s4 1983009808
    %v497 = vunpack.c.0.s8 %v496
    %v498 = vperm.slane %v492, %v497
    %v500 = vunpack.c.l.s4 1983009808
    %v501 = vunpack.c.0.s8 %v500
    %v502 = vperm.slane %v494, %v501
    %v503 = vrot.slane %v498, 4
    %v504 = vsel %vm311, %v503, %v486
    %v505 = vrot.slane %v486, 4
    %v506 = vsel %vm311, %v498, %v505
    %v508 = vunpack.c.l.s4 1934713408
    %v509 = vunpack.c.0.s8 %v508
    %v510 = vperm.slane %v504, %v509
    %v512 = vunpack.c.l.s4 1934713408
    %v513 = vunpack.c.0.s8 %v512
    %v514 = vperm.slane %v506, %v513
    %v515 = vrot.slane %v502, 4
    %v516 = vsel %vm311, %v515, %v490
    %v517 = vrot.slane %v490, 4
    %v518 = vsel %vm311, %v502, %v517
    %v520 = vunpack.c.l.s4 1934713408
    %v521 = vunpack.c.0.s8 %v520
    %v522 = vperm.slane %v516, %v521
    %v524 = vunpack.c.l.s4 1934713408
    %v525 = vunpack.c.0.s8 %v524
    %v526 = vperm.slane %v518, %v525
    %v527 = vrot.slane %v510, 4
    %v528 = vsel %vm311, 0.0, %v527
    %v529 = vrot.slane %v514, 4
    %v530 = vsel %vm311, 0.0, %v529
    %v531 = vrot.slane %v522, 4
    %v532 = vsel %vm311, 0.0, %v531
    %v533 = vrot.slane %v526, 4
    %v534 = vsel %vm311, 0.0, %v533
    %v535 = vrot.slane %v202, 4
    %v536 = vsel %vm311, %v535, %v74
    %v537 = vrot.slane %v74, 4
    %v538 = vsel %vm311, %v202, %v537
    %v540 = vunpack.c.l.s4 1983009808
    %v541 = vunpack.c.0.s8 %v540
    %v542 = vperm.slane %v536, %v541
    %v544 = vunpack.c.l.s4 1983009808
    %v545 = vunpack.c.0.s8 %v544
    %v546 = vperm.slane %v538, %v545
    %v547 = vrot.slane %v266, 4
    %v548 = vsel %vm311, %v547, %v138
    %v549 = vrot.slane %v138, 4
    %v550 = vsel %vm311, %v266, %v549
    %v552 = vunpack.c.l.s4 1983009808
    %v553 = vunpack.c.0.s8 %v552
    %v554 = vperm.slane %v548, %v553
    %v556 = vunpack.c.l.s4 1983009808
    %v557 = vunpack.c.0.s8 %v556
    %v558 = vperm.slane %v550, %v557
    %v559 = vrot.slane %v554, 4
    %v560 = vsel %vm311, %v559, %v542
    %v561 = vrot.slane %v542, 4
    %v562 = vsel %vm311, %v554, %v561
    %v564 = vunpack.c.l.s4 1934713408
    %v565 = vunpack.c.0.s8 %v564
    %v566 = vperm.slane %v560, %v565
    %v568 = vunpack.c.l.s4 1934713408
    %v569 = vunpack.c.0.s8 %v568
    %v570 = vperm.slane %v562, %v569
    %v571 = vrot.slane %v558, 4
    %v572 = vsel %vm311, %v571, %v546
    %v573 = vrot.slane %v546, 4
    %v574 = vsel %vm311, %v558, %v573
    %v576 = vunpack.c.l.s4 1934713408
    %v577 = vunpack.c.0.s8 %v576
    %v578 = vperm.slane %v572, %v577
    %v580 = vunpack.c.l.s4 1934713408
    %v581 = vunpack.c.0.s8 %v580
    %v582 = vperm.slane %v574, %v581
    %v583 = vrot.slane %v566, 4
    %v584 = vsel %vm311, 0.0, %v583
    %v585 = vrot.slane %v570, 4
    %v586 = vsel %vm311, 0.0, %v585
    %v587 = vrot.slane %v578, 4
    %v588 = vsel %vm311, 0.0, %v587
    %v589 = vrot.slane %v582, 4
    %v590 = vsel %vm311, 0.0, %v589
    %v591 = vrot.slane %v203, 4
    %v592 = vsel %vm311, %v591, %v75
    %v593 = vrot.slane %v75, 4
    %v594 = vsel %vm311, %v203, %v593
    %v596 = vunpack.c.l.s4 1983009808
    %v597 = vunpack.c.0.s8 %v596
    %v598 = vperm.slane %v592, %v597
    %v600 = vunpack.c.l.s4 1983009808
    %v601 = vunpack.c.0.s8 %v600
    %v602 = vperm.slane %v594, %v601
    %v603 = vrot.slane %v267, 4
    %v604 = vsel %vm311, %v603, %v139
    %v605 = vrot.slane %v139, 4
    %v606 = vsel %vm311, %v267, %v605
    %v608 = vunpack.c.l.s4 1983009808
    %v609 = vunpack.c.0.s8 %v608
    %v610 = vperm.slane %v604, %v609
    %v612 = vunpack.c.l.s4 1983009808
    %v613 = vunpack.c.0.s8 %v612
    %v614 = vperm.slane %v606, %v613
    %v615 = vrot.slane %v610, 4
    %v616 = vsel %vm311, %v615, %v598
    %v617 = vrot.slane %v598, 4
    %v618 = vsel %vm311, %v610, %v617
    %v620 = vunpack.c.l.s4 1934713408
    %v621 = vunpack.c.0.s8 %v620
    %v622 = vperm.slane %v616, %v621
    %v624 = vunpack.c.l.s4 1934713408
    %v625 = vunpack.c.0.s8 %v624
    %v626 = vperm.slane %v618, %v625
    %v627 = vrot.slane %v614, 4
    %v628 = vsel %vm311, %v627, %v602
    %v629 = vrot.slane %v602, 4
    %v630 = vsel %vm311, %v614, %v629
    %v632 = vunpack.c.l.s4 1934713408
    %v633 = vunpack.c.0.s8 %v632
    %v634 = vperm.slane %v628, %v633
    %v636 = vunpack.c.l.s4 1934713408
    %v637 = vunpack.c.0.s8 %v636
    %v638 = vperm.slane %v630, %v637
    %v639 = vrot.slane %v622, 4
    %v640 = vsel %vm311, 0.0, %v639
    %v641 = vrot.slane %v626, 4
    %v642 = vsel %vm311, 0.0, %v641
    %v643 = vrot.slane %v634, 4
    %v644 = vsel %vm311, 0.0, %v643
    %v645 = vrot.slane %v638, 4
    %v646 = vsel %vm311, 0.0, %v645
    %v647 = vrot.slane %v204, 4
    %v648 = vsel %vm311, %v647, %v76
    %v649 = vrot.slane %v76, 4
    %v650 = vsel %vm311, %v204, %v649
    %v652 = vunpack.c.l.s4 1983009808
    %v653 = vunpack.c.0.s8 %v652
    %v654 = vperm.slane %v648, %v653
    %v656 = vunpack.c.l.s4 1983009808
    %v657 = vunpack.c.0.s8 %v656
    %v658 = vperm.slane %v650, %v657
    %v659 = vrot.slane %v268, 4
    %v660 = vsel %vm311, %v659, %v140
    %v661 = vrot.slane %v140, 4
    %v662 = vsel %vm311, %v268, %v661
    %v664 = vunpack.c.l.s4 1983009808
    %v665 = vunpack.c.0.s8 %v664
    %v666 = vperm.slane %v660, %v665
    %v668 = vunpack.c.l.s4 1983009808
    %v669 = vunpack.c.0.s8 %v668
    %v670 = vperm.slane %v662, %v669
    %v671 = vrot.slane %v666, 4
    %v672 = vsel %vm311, %v671, %v654
    %v673 = vrot.slane %v654, 4
    %v674 = vsel %vm311, %v666, %v673
    %v676 = vunpack.c.l.s4 1934713408
    %v677 = vunpack.c.0.s8 %v676
    %v678 = vperm.slane %v672, %v677
    %v680 = vunpack.c.l.s4 1934713408
    %v681 = vunpack.c.0.s8 %v680
    %v682 = vperm.slane %v674, %v681
    %v683 = vrot.slane %v670, 4
    %v684 = vsel %vm311, %v683, %v658
    %v685 = vrot.slane %v658, 4
    %v686 = vsel %vm311, %v670, %v685
    %v688 = vunpack.c.l.s4 1934713408
    %v689 = vunpack.c.0.s8 %v688
    %v690 = vperm.slane %v684, %v689
    %v692 = vunpack.c.l.s4 1934713408
    %v693 = vunpack.c.0.s8 %v692
    %v694 = vperm.slane %v686, %v693
    %v695 = vrot.slane %v678, 4
    %v696 = vsel %vm311, 0.0, %v695
    %v697 = vrot.slane %v682, 4
    %v698 = vsel %vm311, 0.0, %v697
    %v699 = vrot.slane %v690, 4
    %v700 = vsel %vm311, 0.0, %v699
    %v701 = vrot.slane %v694, 4
    %v702 = vsel %vm311, 0.0, %v701
    %v703 = vrot.slane %v205, 4
    %v704 = vsel %vm311, %v703, %v77
    %v705 = vrot.slane %v77, 4
    %v706 = vsel %vm311, %v205, %v705
    %v708 = vunpack.c.l.s4 1983009808
    %v709 = vunpack.c.0.s8 %v708
    %v710 = vperm.slane %v704, %v709
    %v712 = vunpack.c.l.s4 1983009808
    %v713 = vunpack.c.0.s8 %v712
    %v714 = vperm.slane %v706, %v713
    %v715 = vrot.slane %v269, 4
    %v716 = vsel %vm311, %v715, %v141
    %v717 = vrot.slane %v141, 4
    %v718 = vsel %vm311, %v269, %v717
    %v720 = vunpack.c.l.s4 1983009808
    %v721 = vunpack.c.0.s8 %v720
    %v722 = vperm.slane %v716, %v721
    %v724 = vunpack.c.l.s4 1983009808
    %v725 = vunpack.c.0.s8 %v724
    %v726 = vperm.slane %v718, %v725
    %v727 = vrot.slane %v722, 4
    %v728 = vsel %vm311, %v727, %v710
    %v729 = vrot.slane %v710, 4
    %v730 = vsel %vm311, %v722, %v729
    %v732 = vunpack.c.l.s4 1934713408
    %v733 = vunpack.c.0.s8 %v732
    %v734 = vperm.slane %v728, %v733
    %v736 = vunpack.c.l.s4 1934713408
    %v737 = vunpack.c.0.s8 %v736
    %v738 = vperm.slane %v730, %v737
    %v739 = vrot.slane %v726, 4
    %v740 = vsel %vm311, %v739, %v714
    %v741 = vrot.slane %v714, 4
    %v742 = vsel %vm311, %v726, %v741
    %v744 = vunpack.c.l.s4 1934713408
    %v745 = vunpack.c.0.s8 %v744
    %v746 = vperm.slane %v740, %v745
    %v748 = vunpack.c.l.s4 1934713408
    %v749 = vunpack.c.0.s8 %v748
    %v750 = vperm.slane %v742, %v749
    %v751 = vrot.slane %v734, 4
    %v752 = vsel %vm311, 0.0, %v751
    %v753 = vrot.slane %v738, 4
    %v754 = vsel %vm311, 0.0, %v753
    %v755 = vrot.slane %v746, 4
    %v756 = vsel %vm311, 0.0, %v755
    %v757 = vrot.slane %v750, 4
    %v758 = vsel %vm311, 0.0, %v757
    %v759 = vrot.slane %v206, 4
    %v760 = vsel %vm311, %v759, %v78
    %v761 = vrot.slane %v78, 4
    %v762 = vsel %vm311, %v206, %v761
    %v764 = vunpack.c.l.s4 1983009808
    %v765 = vunpack.c.0.s8 %v764
    %v766 = vperm.slane %v760, %v765
    %v768 = vunpack.c.l.s4 1983009808
    %v769 = vunpack.c.0.s8 %v768
    %v770 = vperm.slane %v762, %v769
    %v771 = vrot.slane %v270, 4
    %v772 = vsel %vm311, %v771, %v142
    %v773 = vrot.slane %v142, 4
    %v774 = vsel %vm311, %v270, %v773
    %v776 = vunpack.c.l.s4 1983009808
    %v777 = vunpack.c.0.s8 %v776
    %v778 = vperm.slane %v772, %v777
    %v780 = vunpack.c.l.s4 1983009808
    %v781 = vunpack.c.0.s8 %v780
    %v782 = vperm.slane %v774, %v781
    %v783 = vrot.slane %v778, 4
    %v784 = vsel %vm311, %v783, %v766
    %v785 = vrot.slane %v766, 4
    %v786 = vsel %vm311, %v778, %v785
    %v788 = vunpack.c.l.s4 1934713408
    %v789 = vunpack.c.0.s8 %v788
    %v790 = vperm.slane %v784, %v789
    %v792 = vunpack.c.l.s4 1934713408
    %v793 = vunpack.c.0.s8 %v792
    %v794 = vperm.slane %v786, %v793
    %v795 = vrot.slane %v782, 4
    %v796 = vsel %vm311, %v795, %v770
    %v797 = vrot.slane %v770, 4
    %v798 = vsel %vm311, %v782, %v797
    %v800 = vunpack.c.l.s4 1934713408
    %v801 = vunpack.c.0.s8 %v800
    %v802 = vperm.slane %v796, %v801
    %v804 = vunpack.c.l.s4 1934713408
    %v805 = vunpack.c.0.s8 %v804
    %v806 = vperm.slane %v798, %v805
    %v807 = vrot.slane %v790, 4
    %v808 = vsel %vm311, 0.0, %v807
    %v809 = vrot.slane %v794, 4
    %v810 = vsel %vm311, 0.0, %v809
    %v811 = vrot.slane %v802, 4
    %v812 = vsel %vm311, 0.0, %v811
    %v813 = vrot.slane %v806, 4
    %v814 = vsel %vm311, 0.0, %v813
    %v815 = vrot.slane %v207, 4
    %v816 = vsel %vm311, %v815, %v79
    %v817 = vrot.slane %v79, 4
    %v818 = vsel %vm311, %v207, %v817
    %v820 = vunpack.c.l.s4 1983009808
    %v821 = vunpack.c.0.s8 %v820
    %v822 = vperm.slane %v816, %v821
    %v824 = vunpack.c.l.s4 1983009808
    %v825 = vunpack.c.0.s8 %v824
    %v826 = vperm.slane %v818, %v825
    %v827 = vrot.slane %v271, 4
    %v828 = vsel %vm311, %v827, %v143
    %v829 = vrot.slane %v143, 4
    %v830 = vsel %vm311, %v271, %v829
    %v832 = vunpack.c.l.s4 1983009808
    %v833 = vunpack.c.0.s8 %v832
    %v834 = vperm.slane %v828, %v833
    %v836 = vunpack.c.l.s4 1983009808
    %v837 = vunpack.c.0.s8 %v836
    %v838 = vperm.slane %v830, %v837
    %v839 = vrot.slane %v834, 4
    %v840 = vsel %vm311, %v839, %v822
    %v841 = vrot.slane %v822, 4
    %v842 = vsel %vm311, %v834, %v841
    %v844 = vunpack.c.l.s4 1934713408
    %v845 = vunpack.c.0.s8 %v844
    %v846 = vperm.slane %v840, %v845
    %v848 = vunpack.c.l.s4 1934713408
    %v849 = vunpack.c.0.s8 %v848
    %v850 = vperm.slane %v842, %v849
    %v851 = vrot.slane %v838, 4
    %v852 = vsel %vm311, %v851, %v826
    %v853 = vrot.slane %v826, 4
    %v854 = vsel %vm311, %v838, %v853
    %v856 = vunpack.c.l.s4 1934713408
    %v857 = vunpack.c.0.s8 %v856
    %v858 = vperm.slane %v852, %v857
    %v860 = vunpack.c.l.s4 1934713408
    %v861 = vunpack.c.0.s8 %v860
    %v862 = vperm.slane %v854, %v861
    %v863 = vrot.slane %v846, 4
    %v864 = vsel %vm311, 0.0, %v863
    %v865 = vrot.slane %v850, 4
    %v866 = vsel %vm311, 0.0, %v865
    %v867 = vrot.slane %v858, 4
    %v868 = vsel %vm311, 0.0, %v867
    %v869 = vrot.slane %v862, 4
    %v870 = vsel %vm311, 0.0, %v869
    %v871 = vrot.slane %v208, 4
    %v872 = vsel %vm311, %v871, %v80
    %v873 = vrot.slane %v80, 4
    %v874 = vsel %vm311, %v208, %v873
    %v876 = vunpack.c.l.s4 1983009808
    %v877 = vunpack.c.0.s8 %v876
    %v878 = vperm.slane %v872, %v877
    %v880 = vunpack.c.l.s4 1983009808
    %v881 = vunpack.c.0.s8 %v880
    %v882 = vperm.slane %v874, %v881
    %v883 = vrot.slane %v272, 4
    %v884 = vsel %vm311, %v883, %v144
    %v885 = vrot.slane %v144, 4
    %v886 = vsel %vm311, %v272, %v885
    %v888 = vunpack.c.l.s4 1983009808
    %v889 = vunpack.c.0.s8 %v888
    %v890 = vperm.slane %v884, %v889
    %v892 = vunpack.c.l.s4 1983009808
    %v893 = vunpack.c.0.s8 %v892
    %v894 = vperm.slane %v886, %v893
    %v895 = vrot.slane %v890, 4
    %v896 = vsel %vm311, %v895, %v878
    %v897 = vrot.slane %v878, 4
    %v898 = vsel %vm311, %v890, %v897
    %v900 = vunpack.c.l.s4 1934713408
    %v901 = vunpack.c.0.s8 %v900
    %v902 = vperm.slane %v896, %v901
    %v904 = vunpack.c.l.s4 1934713408
    %v905 = vunpack.c.0.s8 %v904
    %v906 = vperm.slane %v898, %v905
    %v907 = vrot.slane %v894, 4
    %v908 = vsel %vm311, %v907, %v882
    %v909 = vrot.slane %v882, 4
    %v910 = vsel %vm311, %v894, %v909
    %v912 = vunpack.c.l.s4 1934713408
    %v913 = vunpack.c.0.s8 %v912
    %v914 = vperm.slane %v908, %v913
    %v916 = vunpack.c.l.s4 1934713408
    %v917 = vunpack.c.0.s8 %v916
    %v918 = vperm.slane %v910, %v917
    %v919 = vrot.slane %v902, 4
    %v920 = vsel %vm311, 0.0, %v919
    %v921 = vrot.slane %v906, 4
    %v922 = vsel %vm311, 0.0, %v921
    %v923 = vrot.slane %v914, 4
    %v924 = vsel %vm311, 0.0, %v923
    %v925 = vrot.slane %v918, 4
    %v926 = vsel %vm311, 0.0, %v925
    %v927 = vrot.slane %v209, 4
    %v928 = vsel %vm311, %v927, %v81
    %v929 = vrot.slane %v81, 4
    %v930 = vsel %vm311, %v209, %v929
    %v932 = vunpack.c.l.s4 1983009808
    %v933 = vunpack.c.0.s8 %v932
    %v934 = vperm.slane %v928, %v933
    %v936 = vunpack.c.l.s4 1983009808
    %v937 = vunpack.c.0.s8 %v936
    %v938 = vperm.slane %v930, %v937
    %v939 = vrot.slane %v273, 4
    %v940 = vsel %vm311, %v939, %v145
    %v941 = vrot.slane %v145, 4
    %v942 = vsel %vm311, %v273, %v941
    %v944 = vunpack.c.l.s4 1983009808
    %v945 = vunpack.c.0.s8 %v944
    %v946 = vperm.slane %v940, %v945
    %v948 = vunpack.c.l.s4 1983009808
    %v949 = vunpack.c.0.s8 %v948
    %v950 = vperm.slane %v942, %v949
    %v951 = vrot.slane %v946, 4
    %v952 = vsel %vm311, %v951, %v934
    %v953 = vrot.slane %v934, 4
    %v954 = vsel %vm311, %v946, %v953
    %v956 = vunpack.c.l.s4 1934713408
    %v957 = vunpack.c.0.s8 %v956
    %v958 = vperm.slane %v952, %v957
    %v960 = vunpack.c.l.s4 1934713408
    %v961 = vunpack.c.0.s8 %v960
    %v962 = vperm.slane %v954, %v961
    %v963 = vrot.slane %v950, 4
    %v964 = vsel %vm311, %v963, %v938
    %v965 = vrot.slane %v938, 4
    %v966 = vsel %vm311, %v950, %v965
    %v968 = vunpack.c.l.s4 1934713408
    %v969 = vunpack.c.0.s8 %v968
    %v970 = vperm.slane %v964, %v969
    %v972 = vunpack.c.l.s4 1934713408
    %v973 = vunpack.c.0.s8 %v972
    %v974 = vperm.slane %v966, %v973
    %v975 = vrot.slane %v958, 4
    %v976 = vsel %vm311, 0.0, %v975
    %v977 = vrot.slane %v962, 4
    %v978 = vsel %vm311, 0.0, %v977
    %v979 = vrot.slane %v970, 4
    %v980 = vsel %vm311, 0.0, %v979
    %v981 = vrot.slane %v974, 4
    %v982 = vsel %vm311, 0.0, %v981
    %v983 = vrot.slane %v210, 4
    %v984 = vsel %vm311, %v983, %v82
    %v985 = vrot.slane %v82, 4
    %v986 = vsel %vm311, %v210, %v985
    %v988 = vunpack.c.l.s4 1983009808
    %v989 = vunpack.c.0.s8 %v988
    %v990 = vperm.slane %v984, %v989
    %v992 = vunpack.c.l.s4 1983009808
    %v993 = vunpack.c.0.s8 %v992
    %v994 = vperm.slane %v986, %v993
    %v995 = vrot.slane %v274, 4
    %v996 = vsel %vm311, %v995, %v146
    %v997 = vrot.slane %v146, 4
    %v998 = vsel %vm311, %v274, %v997
    %v1000 = vunpack.c.l.s4 1983009808
    %v1001 = vunpack.c.0.s8 %v1000
    %v1002 = vperm.slane %v996, %v1001
    %v1004 = vunpack.c.l.s4 1983009808
    %v1005 = vunpack.c.0.s8 %v1004
    %v1006 = vperm.slane %v998, %v1005
    %v1007 = vrot.slane %v1002, 4
    %v1008 = vsel %vm311, %v1007, %v990
    %v1009 = vrot.slane %v990, 4
    %v1010 = vsel %vm311, %v1002, %v1009
    %v1012 = vunpack.c.l.s4 1934713408
    %v1013 = vunpack.c.0.s8 %v1012
    %v1014 = vperm.slane %v1008, %v1013
    %v1016 = vunpack.c.l.s4 1934713408
    %v1017 = vunpack.c.0.s8 %v1016
    %v1018 = vperm.slane %v1010, %v1017
    %v1019 = vrot.slane %v1006, 4
    %v1020 = vsel %vm311, %v1019, %v994
    %v1021 = vrot.slane %v994, 4
    %v1022 = vsel %vm311, %v1006, %v1021
    %v1024 = vunpack.c.l.s4 1934713408
    %v1025 = vunpack.c.0.s8 %v1024
    %v1026 = vperm.slane %v1020, %v1025
    %v1028 = vunpack.c.l.s4 1934713408
    %v1029 = vunpack.c.0.s8 %v1028
    %v1030 = vperm.slane %v1022, %v1029
    %v1031 = vrot.slane %v1014, 4
    %v1032 = vsel %vm311, 0.0, %v1031
    %v1033 = vrot.slane %v1018, 4
    %v1034 = vsel %vm311, 0.0, %v1033
    %v1035 = vrot.slane %v1026, 4
    %v1036 = vsel %vm311, 0.0, %v1035
    %v1037 = vrot.slane %v1030, 4
    %v1038 = vsel %vm311, 0.0, %v1037
    %v1039 = vrot.slane %v211, 4
    %v1040 = vsel %vm311, %v1039, %v83
    %v1041 = vrot.slane %v83, 4
    %v1042 = vsel %vm311, %v211, %v1041
    %v1044 = vunpack.c.l.s4 1983009808
    %v1045 = vunpack.c.0.s8 %v1044
    %v1046 = vperm.slane %v1040, %v1045
    %v1048 = vunpack.c.l.s4 1983009808
    %v1049 = vunpack.c.0.s8 %v1048
    %v1050 = vperm.slane %v1042, %v1049
    %v1051 = vrot.slane %v275, 4
    %v1052 = vsel %vm311, %v1051, %v147
    %v1053 = vrot.slane %v147, 4
    %v1054 = vsel %vm311, %v275, %v1053
    %v1056 = vunpack.c.l.s4 1983009808
    %v1057 = vunpack.c.0.s8 %v1056
    %v1058 = vperm.slane %v1052, %v1057
    %v1060 = vunpack.c.l.s4 1983009808
    %v1061 = vunpack.c.0.s8 %v1060
    %v1062 = vperm.slane %v1054, %v1061
    %v1063 = vrot.slane %v1058, 4
    %v1064 = vsel %vm311, %v1063, %v1046
    %v1065 = vrot.slane %v1046, 4
    %v1066 = vsel %vm311, %v1058, %v1065
    %v1068 = vunpack.c.l.s4 1934713408
    %v1069 = vunpack.c.0.s8 %v1068
    %v1070 = vperm.slane %v1064, %v1069
    %v1072 = vunpack.c.l.s4 1934713408
    %v1073 = vunpack.c.0.s8 %v1072
    %v1074 = vperm.slane %v1066, %v1073
    %v1075 = vrot.slane %v1062, 4
    %v1076 = vsel %vm311, %v1075, %v1050
    %v1077 = vrot.slane %v1050, 4
    %v1078 = vsel %vm311, %v1062, %v1077
    %v1080 = vunpack.c.l.s4 1934713408
    %v1081 = vunpack.c.0.s8 %v1080
    %v1082 = vperm.slane %v1076, %v1081
    %v1084 = vunpack.c.l.s4 1934713408
    %v1085 = vunpack.c.0.s8 %v1084
    %v1086 = vperm.slane %v1078, %v1085
    %v1087 = vrot.slane %v1070, 4
    %v1088 = vsel %vm311, 0.0, %v1087
    %v1089 = vrot.slane %v1074, 4
    %v1090 = vsel %vm311, 0.0, %v1089
    %v1091 = vrot.slane %v1082, 4
    %v1092 = vsel %vm311, 0.0, %v1091
    %v1093 = vrot.slane %v1086, 4
    %v1094 = vsel %vm311, 0.0, %v1093
    %v1095 = vrot.slane %v212, 4
    %v1096 = vsel %vm311, %v1095, %v84
    %v1097 = vrot.slane %v84, 4
    %v1098 = vsel %vm311, %v212, %v1097
    %v1100 = vunpack.c.l.s4 1983009808
    %v1101 = vunpack.c.0.s8 %v1100
    %v1102 = vperm.slane %v1096, %v1101
    %v1104 = vunpack.c.l.s4 1983009808
    %v1105 = vunpack.c.0.s8 %v1104
    %v1106 = vperm.slane %v1098, %v1105
    %v1107 = vrot.slane %v276, 4
    %v1108 = vsel %vm311, %v1107, %v148
    %v1109 = vrot.slane %v148, 4
    %v1110 = vsel %vm311, %v276, %v1109
    %v1112 = vunpack.c.l.s4 1983009808
    %v1113 = vunpack.c.0.s8 %v1112
    %v1114 = vperm.slane %v1108, %v1113
    %v1116 = vunpack.c.l.s4 1983009808
    %v1117 = vunpack.c.0.s8 %v1116
    %v1118 = vperm.slane %v1110, %v1117
    %v1119 = vrot.slane %v1114, 4
    %v1120 = vsel %vm311, %v1119, %v1102
    %v1121 = vrot.slane %v1102, 4
    %v1122 = vsel %vm311, %v1114, %v1121
    %v1124 = vunpack.c.l.s4 1934713408
    %v1125 = vunpack.c.0.s8 %v1124
    %v1126 = vperm.slane %v1120, %v1125
    %v1128 = vunpack.c.l.s4 1934713408
    %v1129 = vunpack.c.0.s8 %v1128
    %v1130 = vperm.slane %v1122, %v1129
    %v1131 = vrot.slane %v1118, 4
    %v1132 = vsel %vm311, %v1131, %v1106
    %v1133 = vrot.slane %v1106, 4
    %v1134 = vsel %vm311, %v1118, %v1133
    %v1136 = vunpack.c.l.s4 1934713408
    %v1137 = vunpack.c.0.s8 %v1136
    %v1138 = vperm.slane %v1132, %v1137
    %v1140 = vunpack.c.l.s4 1934713408
    %v1141 = vunpack.c.0.s8 %v1140
    %v1142 = vperm.slane %v1134, %v1141
    %v1143 = vrot.slane %v1126, 4
    %v1144 = vsel %vm311, 0.0, %v1143
    %v1145 = vrot.slane %v1130, 4
    %v1146 = vsel %vm311, 0.0, %v1145
    %v1147 = vrot.slane %v1138, 4
    %v1148 = vsel %vm311, 0.0, %v1147
    %v1149 = vrot.slane %v1142, 4
    %v1150 = vsel %vm311, 0.0, %v1149
    %v1151 = vrot.slane %v213, 4
    %v1152 = vsel %vm311, %v1151, %v85
    %v1153 = vrot.slane %v85, 4
    %v1154 = vsel %vm311, %v213, %v1153
    %v1156 = vunpack.c.l.s4 1983009808
    %v1157 = vunpack.c.0.s8 %v1156
    %v1158 = vperm.slane %v1152, %v1157
    %v1160 = vunpack.c.l.s4 1983009808
    %v1161 = vunpack.c.0.s8 %v1160
    %v1162 = vperm.slane %v1154, %v1161
    %v1163 = vrot.slane %v277, 4
    %v1164 = vsel %vm311, %v1163, %v149
    %v1165 = vrot.slane %v149, 4
    %v1166 = vsel %vm311, %v277, %v1165
    %v1168 = vunpack.c.l.s4 1983009808
    %v1169 = vunpack.c.0.s8 %v1168
    %v1170 = vperm.slane %v1164, %v1169
    %v1172 = vunpack.c.l.s4 1983009808
    %v1173 = vunpack.c.0.s8 %v1172
    %v1174 = vperm.slane %v1166, %v1173
    %v1175 = vrot.slane %v1170, 4
    %v1176 = vsel %vm311, %v1175, %v1158
    %v1177 = vrot.slane %v1158, 4
    %v1178 = vsel %vm311, %v1170, %v1177
    %v1180 = vunpack.c.l.s4 1934713408
    %v1181 = vunpack.c.0.s8 %v1180
    %v1182 = vperm.slane %v1176, %v1181
    %v1184 = vunpack.c.l.s4 1934713408
    %v1185 = vunpack.c.0.s8 %v1184
    %v1186 = vperm.slane %v1178, %v1185
    %v1187 = vrot.slane %v1174, 4
    %v1188 = vsel %vm311, %v1187, %v1162
    %v1189 = vrot.slane %v1162, 4
    %v1190 = vsel %vm311, %v1174, %v1189
    %v1192 = vunpack.c.l.s4 1934713408
    %v1193 = vunpack.c.0.s8 %v1192
    %v1194 = vperm.slane %v1188, %v1193
    %v1196 = vunpack.c.l.s4 1934713408
    %v1197 = vunpack.c.0.s8 %v1196
    %v1198 = vperm.slane %v1190, %v1197
    %v1199 = vrot.slane %v1182, 4
    %v1200 = vsel %vm311, 0.0, %v1199
    %v1201 = vrot.slane %v1186, 4
    %v1202 = vsel %vm311, 0.0, %v1201
    %v1203 = vrot.slane %v1194, 4
    %v1204 = vsel %vm311, 0.0, %v1203
    %v1205 = vrot.slane %v1198, 4
    %v1206 = vsel %vm311, 0.0, %v1205
    %v1207 = vrot.slane %v230, 4
    %v1208 = vsel %vm311, %v1207, %v102
    %v1209 = vrot.slane %v102, 4
    %v1210 = vsel %vm311, %v230, %v1209
    %v1212 = vunpack.c.l.s4 1983009808
    %v1213 = vunpack.c.0.s8 %v1212
    %v1214 = vperm.slane %v1208, %v1213
    %v1216 = vunpack.c.l.s4 1983009808
    %v1217 = vunpack.c.0.s8 %v1216
    %v1218 = vperm.slane %v1210, %v1217
    %v1219 = vrot.slane %v294, 4
    %v1220 = vsel %vm311, %v1219, %v166
    %v1221 = vrot.slane %v166, 4
    %v1222 = vsel %vm311, %v294, %v1221
    %v1224 = vunpack.c.l.s4 1983009808
    %v1225 = vunpack.c.0.s8 %v1224
    %v1226 = vperm.slane %v1220, %v1225
    %v1228 = vunpack.c.l.s4 1983009808
    %v1229 = vunpack.c.0.s8 %v1228
    %v1230 = vperm.slane %v1222, %v1229
    %v1231 = vrot.slane %v1226, 4
    %v1232 = vsel %vm311, %v1231, %v1214
    %v1233 = vrot.slane %v1214, 4
    %v1234 = vsel %vm311, %v1226, %v1233
    %v1236 = vunpack.c.l.s4 1934713408
    %v1237 = vunpack.c.0.s8 %v1236
    %v1238 = vperm.slane %v1232, %v1237
    %v1240 = vunpack.c.l.s4 1934713408
    %v1241 = vunpack.c.0.s8 %v1240
    %v1242 = vperm.slane %v1234, %v1241
    %v1243 = vrot.slane %v1230, 4
    %v1244 = vsel %vm311, %v1243, %v1218
    %v1245 = vrot.slane %v1218, 4
    %v1246 = vsel %vm311, %v1230, %v1245
    %v1248 = vunpack.c.l.s4 1934713408
    %v1249 = vunpack.c.0.s8 %v1248
    %v1250 = vperm.slane %v1244, %v1249
    %v1252 = vunpack.c.l.s4 1934713408
    %v1253 = vunpack.c.0.s8 %v1252
    %v1254 = vperm.slane %v1246, %v1253
    %v1255 = vrot.slane %v1238, 4
    %v1256 = vsel %vm311, 0.0, %v1255
    %v1257 = vrot.slane %v1242, 4
    %v1258 = vsel %vm311, 0.0, %v1257
    %v1259 = vrot.slane %v1250, 4
    %v1260 = vsel %vm311, 0.0, %v1259
    %v1261 = vrot.slane %v1254, 4
    %v1262 = vsel %vm311, 0.0, %v1261
    %v1263 = vrot.slane %v231, 4
    %v1264 = vsel %vm311, %v1263, %v103
    %v1265 = vrot.slane %v103, 4
    %v1266 = vsel %vm311, %v231, %v1265
    %v1268 = vunpack.c.l.s4 1983009808
    %v1269 = vunpack.c.0.s8 %v1268
    %v1270 = vperm.slane %v1264, %v1269
    %v1272 = vunpack.c.l.s4 1983009808
    %v1273 = vunpack.c.0.s8 %v1272
    %v1274 = vperm.slane %v1266, %v1273
    %v1275 = vrot.slane %v295, 4
    %v1276 = vsel %vm311, %v1275, %v167
    %v1277 = vrot.slane %v167, 4
    %v1278 = vsel %vm311, %v295, %v1277
    %v1280 = vunpack.c.l.s4 1983009808
    %v1281 = vunpack.c.0.s8 %v1280
    %v1282 = vperm.slane %v1276, %v1281
    %v1284 = vunpack.c.l.s4 1983009808
    %v1285 = vunpack.c.0.s8 %v1284
    %v1286 = vperm.slane %v1278, %v1285
    %v1287 = vrot.slane %v1282, 4
    %v1288 = vsel %vm311, %v1287, %v1270
    %v1289 = vrot.slane %v1270, 4
    %v1290 = vsel %vm311, %v1282, %v1289
    %v1292 = vunpack.c.l.s4 1934713408
    %v1293 = vunpack.c.0.s8 %v1292
    %v1294 = vperm.slane %v1288, %v1293
    %v1296 = vunpack.c.l.s4 1934713408
    %v1297 = vunpack.c.0.s8 %v1296
    %v1298 = vperm.slane %v1290, %v1297
    %v1299 = vrot.slane %v1286, 4
    %v1300 = vsel %vm311, %v1299, %v1274
    %v1301 = vrot.slane %v1274, 4
    %v1302 = vsel %vm311, %v1286, %v1301
    %v1304 = vunpack.c.l.s4 1934713408
    %v1305 = vunpack.c.0.s8 %v1304
    %v1306 = vperm.slane %v1300, %v1305
    %v1308 = vunpack.c.l.s4 1934713408
    %v1309 = vunpack.c.0.s8 %v1308
    %v1310 = vperm.slane %v1302, %v1309
    %v1311 = vrot.slane %v1294, 4
    %v1312 = vsel %vm311, 0.0, %v1311
    %v1313 = vrot.slane %v1298, 4
    %v1314 = vsel %vm311, 0.0, %v1313
    %v1315 = vrot.slane %v1306, 4
    %v1316 = vsel %vm311, 0.0, %v1315
    %v1317 = vrot.slane %v1310, 4
    %v1318 = vsel %vm311, 0.0, %v1317
    %v1319 = vrot.slane %v232, 4
    %v1320 = vsel %vm311, %v1319, %v104
    %v1321 = vrot.slane %v104, 4
    %v1322 = vsel %vm311, %v232, %v1321
    %v1324 = vunpack.c.l.s4 1983009808
    %v1325 = vunpack.c.0.s8 %v1324
    %v1326 = vperm.slane %v1320, %v1325
    %v1328 = vunpack.c.l.s4 1983009808
    %v1329 = vunpack.c.0.s8 %v1328
    %v1330 = vperm.slane %v1322, %v1329
    %v1331 = vrot.slane %v296, 4
    %v1332 = vsel %vm311, %v1331, %v168
    %v1333 = vrot.slane %v168, 4
    %v1334 = vsel %vm311, %v296, %v1333
    %v1336 = vunpack.c.l.s4 1983009808
    %v1337 = vunpack.c.0.s8 %v1336
    %v1338 = vperm.slane %v1332, %v1337
    %v1340 = vunpack.c.l.s4 1983009808
    %v1341 = vunpack.c.0.s8 %v1340
    %v1342 = vperm.slane %v1334, %v1341
    %v1343 = vrot.slane %v1338, 4
    %v1344 = vsel %vm311, %v1343, %v1326
    %v1345 = vrot.slane %v1326, 4
    %v1346 = vsel %vm311, %v1338, %v1345
    %v1348 = vunpack.c.l.s4 1934713408
    %v1349 = vunpack.c.0.s8 %v1348
    %v1350 = vperm.slane %v1344, %v1349
    %v1352 = vunpack.c.l.s4 1934713408
    %v1353 = vunpack.c.0.s8 %v1352
    %v1354 = vperm.slane %v1346, %v1353
    %v1355 = vrot.slane %v1342, 4
    %v1356 = vsel %vm311, %v1355, %v1330
    %v1357 = vrot.slane %v1330, 4
    %v1358 = vsel %vm311, %v1342, %v1357
    %v1360 = vunpack.c.l.s4 1934713408
    %v1361 = vunpack.c.0.s8 %v1360
    %v1362 = vperm.slane %v1356, %v1361
    %v1364 = vunpack.c.l.s4 1934713408
    %v1365 = vunpack.c.0.s8 %v1364
    %v1366 = vperm.slane %v1358, %v1365
    %v1367 = vrot.slane %v1350, 4
    %v1368 = vsel %vm311, 0.0, %v1367
    %v1369 = vrot.slane %v1354, 4
    %v1370 = vsel %vm311, 0.0, %v1369
    %v1371 = vrot.slane %v1362, 4
    %v1372 = vsel %vm311, 0.0, %v1371
    %v1373 = vrot.slane %v1366, 4
    %v1374 = vsel %vm311, 0.0, %v1373
    %v1375 = vrot.slane %v233, 4
    %v1376 = vsel %vm311, %v1375, %v105
    %v1377 = vrot.slane %v105, 4
    %v1378 = vsel %vm311, %v233, %v1377
    %v1380 = vunpack.c.l.s4 1983009808
    %v1381 = vunpack.c.0.s8 %v1380
    %v1382 = vperm.slane %v1376, %v1381
    %v1384 = vunpack.c.l.s4 1983009808
    %v1385 = vunpack.c.0.s8 %v1384
    %v1386 = vperm.slane %v1378, %v1385
    %v1387 = vrot.slane %v297, 4
    %v1388 = vsel %vm311, %v1387, %v169
    %v1389 = vrot.slane %v169, 4
    %v1390 = vsel %vm311, %v297, %v1389
    %v1392 = vunpack.c.l.s4 1983009808
    %v1393 = vunpack.c.0.s8 %v1392
    %v1394 = vperm.slane %v1388, %v1393
    %v1396 = vunpack.c.l.s4 1983009808
    %v1397 = vunpack.c.0.s8 %v1396
    %v1398 = vperm.slane %v1390, %v1397
    %v1399 = vrot.slane %v1394, 4
    %v1400 = vsel %vm311, %v1399, %v1382
    %v1401 = vrot.slane %v1382, 4
    %v1402 = vsel %vm311, %v1394, %v1401
    %v1404 = vunpack.c.l.s4 1934713408
    %v1405 = vunpack.c.0.s8 %v1404
    %v1406 = vperm.slane %v1400, %v1405
    %v1408 = vunpack.c.l.s4 1934713408
    %v1409 = vunpack.c.0.s8 %v1408
    %v1410 = vperm.slane %v1402, %v1409
    %v1411 = vrot.slane %v1398, 4
    %v1412 = vsel %vm311, %v1411, %v1386
    %v1413 = vrot.slane %v1386, 4
    %v1414 = vsel %vm311, %v1398, %v1413
    %v1416 = vunpack.c.l.s4 1934713408
    %v1417 = vunpack.c.0.s8 %v1416
    %v1418 = vperm.slane %v1412, %v1417
    %v1420 = vunpack.c.l.s4 1934713408
    %v1421 = vunpack.c.0.s8 %v1420
    %v1422 = vperm.slane %v1414, %v1421
    %v1423 = vrot.slane %v1406, 4
    %v1424 = vsel %vm311, 0.0, %v1423
    %v1425 = vrot.slane %v1410, 4
    %v1426 = vsel %vm311, 0.0, %v1425
    %v1427 = vrot.slane %v1418, 4
    %v1428 = vsel %vm311, 0.0, %v1427
    %v1429 = vrot.slane %v1422, 4
    %v1430 = vsel %vm311, 0.0, %v1429
    %v1431 = vrot.slane %v234, 4
    %v1432 = vsel %vm311, %v1431, %v106
    %v1433 = vrot.slane %v106, 4
    %v1434 = vsel %vm311, %v234, %v1433
    %v1436 = vunpack.c.l.s4 1983009808
    %v1437 = vunpack.c.0.s8 %v1436
    %v1438 = vperm.slane %v1432, %v1437
    %v1440 = vunpack.c.l.s4 1983009808
    %v1441 = vunpack.c.0.s8 %v1440
    %v1442 = vperm.slane %v1434, %v1441
    %v1443 = vrot.slane %v298, 4
    %v1444 = vsel %vm311, %v1443, %v170
    %v1445 = vrot.slane %v170, 4
    %v1446 = vsel %vm311, %v298, %v1445
    %v1448 = vunpack.c.l.s4 1983009808
    %v1449 = vunpack.c.0.s8 %v1448
    %v1450 = vperm.slane %v1444, %v1449
    %v1452 = vunpack.c.l.s4 1983009808
    %v1453 = vunpack.c.0.s8 %v1452
    %v1454 = vperm.slane %v1446, %v1453
    %v1455 = vrot.slane %v1450, 4
    %v1456 = vsel %vm311, %v1455, %v1438
    %v1457 = vrot.slane %v1438, 4
    %v1458 = vsel %vm311, %v1450, %v1457
    %v1460 = vunpack.c.l.s4 1934713408
    %v1461 = vunpack.c.0.s8 %v1460
    %v1462 = vperm.slane %v1456, %v1461
    %v1464 = vunpack.c.l.s4 1934713408
    %v1465 = vunpack.c.0.s8 %v1464
    %v1466 = vperm.slane %v1458, %v1465
    %v1467 = vrot.slane %v1454, 4
    %v1468 = vsel %vm311, %v1467, %v1442
    %v1469 = vrot.slane %v1442, 4
    %v1470 = vsel %vm311, %v1454, %v1469
    %v1472 = vunpack.c.l.s4 1934713408
    %v1473 = vunpack.c.0.s8 %v1472
    %v1474 = vperm.slane %v1468, %v1473
    %v1476 = vunpack.c.l.s4 1934713408
    %v1477 = vunpack.c.0.s8 %v1476
    %v1478 = vperm.slane %v1470, %v1477
    %v1479 = vrot.slane %v1462, 4
    %v1480 = vsel %vm311, 0.0, %v1479
    %v1481 = vrot.slane %v1466, 4
    %v1482 = vsel %vm311, 0.0, %v1481
    %v1483 = vrot.slane %v1474, 4
    %v1484 = vsel %vm311, 0.0, %v1483
    %v1485 = vrot.slane %v1478, 4
    %v1486 = vsel %vm311, 0.0, %v1485
    %v1487 = vrot.slane %v235, 4
    %v1488 = vsel %vm311, %v1487, %v107
    %v1489 = vrot.slane %v107, 4
    %v1490 = vsel %vm311, %v235, %v1489
    %v1492 = vunpack.c.l.s4 1983009808
    %v1493 = vunpack.c.0.s8 %v1492
    %v1494 = vperm.slane %v1488, %v1493
    %v1496 = vunpack.c.l.s4 1983009808
    %v1497 = vunpack.c.0.s8 %v1496
    %v1498 = vperm.slane %v1490, %v1497
    %v1499 = vrot.slane %v299, 4
    %v1500 = vsel %vm311, %v1499, %v171
    %v1501 = vrot.slane %v171, 4
    %v1502 = vsel %vm311, %v299, %v1501
    %v1504 = vunpack.c.l.s4 1983009808
    %v1505 = vunpack.c.0.s8 %v1504
    %v1506 = vperm.slane %v1500, %v1505
    %v1508 = vunpack.c.l.s4 1983009808
    %v1509 = vunpack.c.0.s8 %v1508
    %v1510 = vperm.slane %v1502, %v1509
    %v1511 = vrot.slane %v1506, 4
    %v1512 = vsel %vm311, %v1511, %v1494
    %v1513 = vrot.slane %v1494, 4
    %v1514 = vsel %vm311, %v1506, %v1513
    %v1516 = vunpack.c.l.s4 1934713408
    %v1517 = vunpack.c.0.s8 %v1516
    %v1518 = vperm.slane %v1512, %v1517
    %v1520 = vunpack.c.l.s4 1934713408
    %v1521 = vunpack.c.0.s8 %v1520
    %v1522 = vperm.slane %v1514, %v1521
    %v1523 = vrot.slane %v1510, 4
    %v1524 = vsel %vm311, %v1523, %v1498
    %v1525 = vrot.slane %v1498, 4
    %v1526 = vsel %vm311, %v1510, %v1525
    %v1528 = vunpack.c.l.s4 1934713408
    %v1529 = vunpack.c.0.s8 %v1528
    %v1530 = vperm.slane %v1524, %v1529
    %v1532 = vunpack.c.l.s4 1934713408
    %v1533 = vunpack.c.0.s8 %v1532
    %v1534 = vperm.slane %v1526, %v1533
    %v1535 = vrot.slane %v1518, 4
    %v1536 = vsel %vm311, 0.0, %v1535
    %v1537 = vrot.slane %v1522, 4
    %v1538 = vsel %vm311, 0.0, %v1537
    %v1539 = vrot.slane %v1530, 4
    %v1540 = vsel %vm311, 0.0, %v1539
    %v1541 = vrot.slane %v1534, 4
    %v1542 = vsel %vm311, 0.0, %v1541
    %v1543 = vrot.slane %v236, 4
    %v1544 = vsel %vm311, %v1543, %v108
    %v1545 = vrot.slane %v108, 4
    %v1546 = vsel %vm311, %v236, %v1545
    %v1548 = vunpack.c.l.s4 1983009808
    %v1549 = vunpack.c.0.s8 %v1548
    %v1550 = vperm.slane %v1544, %v1549
    %v1552 = vunpack.c.l.s4 1983009808
    %v1553 = vunpack.c.0.s8 %v1552
    %v1554 = vperm.slane %v1546, %v1553
    %v1555 = vrot.slane %v300, 4
    %v1556 = vsel %vm311, %v1555, %v172
    %v1557 = vrot.slane %v172, 4
    %v1558 = vsel %vm311, %v300, %v1557
    %v1560 = vunpack.c.l.s4 1983009808
    %v1561 = vunpack.c.0.s8 %v1560
    %v1562 = vperm.slane %v1556, %v1561
    %v1564 = vunpack.c.l.s4 1983009808
    %v1565 = vunpack.c.0.s8 %v1564
    %v1566 = vperm.slane %v1558, %v1565
    %v1567 = vrot.slane %v1562, 4
    %v1568 = vsel %vm311, %v1567, %v1550
    %v1569 = vrot.slane %v1550, 4
    %v1570 = vsel %vm311, %v1562, %v1569
    %v1572 = vunpack.c.l.s4 1934713408
    %v1573 = vunpack.c.0.s8 %v1572
    %v1574 = vperm.slane %v1568, %v1573
    %v1576 = vunpack.c.l.s4 1934713408
    %v1577 = vunpack.c.0.s8 %v1576
    %v1578 = vperm.slane %v1570, %v1577
    %v1579 = vrot.slane %v1566, 4
    %v1580 = vsel %vm311, %v1579, %v1554
    %v1581 = vrot.slane %v1554, 4
    %v1582 = vsel %vm311, %v1566, %v1581
    %v1584 = vunpack.c.l.s4 1934713408
    %v1585 = vunpack.c.0.s8 %v1584
    %v1586 = vperm.slane %v1580, %v1585
    %v1588 = vunpack.c.l.s4 1934713408
    %v1589 = vunpack.c.0.s8 %v1588
    %v1590 = vperm.slane %v1582, %v1589
    %v1591 = vrot.slane %v1574, 4
    %v1592 = vsel %vm311, 0.0, %v1591
    %v1593 = vrot.slane %v1578, 4
    %v1594 = vsel %vm311, 0.0, %v1593
    %v1595 = vrot.slane %v1586, 4
    %v1596 = vsel %vm311, 0.0, %v1595
    %v1597 = vrot.slane %v1590, 4
    %v1598 = vsel %vm311, 0.0, %v1597
    %v1599 = vrot.slane %v237, 4
    %v1600 = vsel %vm311, %v1599, %v109
    %v1601 = vrot.slane %v109, 4
    %v1602 = vsel %vm311, %v237, %v1601
    %v1604 = vunpack.c.l.s4 1983009808
    %v1605 = vunpack.c.0.s8 %v1604
    %v1606 = vperm.slane %v1600, %v1605
    %v1608 = vunpack.c.l.s4 1983009808
    %v1609 = vunpack.c.0.s8 %v1608
    %v1610 = vperm.slane %v1602, %v1609
    %v1611 = vrot.slane %v301, 4
    %v1612 = vsel %vm311, %v1611, %v173
    %v1613 = vrot.slane %v173, 4
    %v1614 = vsel %vm311, %v301, %v1613
    %v1616 = vunpack.c.l.s4 1983009808
    %v1617 = vunpack.c.0.s8 %v1616
    %v1618 = vperm.slane %v1612, %v1617
    %v1620 = vunpack.c.l.s4 1983009808
    %v1621 = vunpack.c.0.s8 %v1620
    %v1622 = vperm.slane %v1614, %v1621
    %v1623 = vrot.slane %v1618, 4
    %v1624 = vsel %vm311, %v1623, %v1606
    %v1625 = vrot.slane %v1606, 4
    %v1626 = vsel %vm311, %v1618, %v1625
    %v1628 = vunpack.c.l.s4 1934713408
    %v1629 = vunpack.c.0.s8 %v1628
    %v1630 = vperm.slane %v1624, %v1629
    %v1632 = vunpack.c.l.s4 1934713408
    %v1633 = vunpack.c.0.s8 %v1632
    %v1634 = vperm.slane %v1626, %v1633
    %v1635 = vrot.slane %v1622, 4
    %v1636 = vsel %vm311, %v1635, %v1610
    %v1637 = vrot.slane %v1610, 4
    %v1638 = vsel %vm311, %v1622, %v1637
    %v1640 = vunpack.c.l.s4 1934713408
    %v1641 = vunpack.c.0.s8 %v1640
    %v1642 = vperm.slane %v1636, %v1641
    %v1644 = vunpack.c.l.s4 1934713408
    %v1645 = vunpack.c.0.s8 %v1644
    %v1646 = vperm.slane %v1638, %v1645
    %v1647 = vrot.slane %v1630, 4
    %v1648 = vsel %vm311, 0.0, %v1647
    %v1649 = vrot.slane %v1634, 4
    %v1650 = vsel %vm311, 0.0, %v1649
    %v1651 = vrot.slane %v1642, 4
    %v1652 = vsel %vm311, 0.0, %v1651
    %v1653 = vrot.slane %v1646, 4
    %v1654 = vsel %vm311, 0.0, %v1653
    %v1655 = vrot.slane %v238, 4
    %v1656 = vsel %vm311, %v1655, %v110
    %v1657 = vrot.slane %v110, 4
    %v1658 = vsel %vm311, %v238, %v1657
    %v1660 = vunpack.c.l.s4 1983009808
    %v1661 = vunpack.c.0.s8 %v1660
    %v1662 = vperm.slane %v1656, %v1661
    %v1664 = vunpack.c.l.s4 1983009808
    %v1665 = vunpack.c.0.s8 %v1664
    %v1666 = vperm.slane %v1658, %v1665
    %v1667 = vrot.slane %v302, 4
    %v1668 = vsel %vm311, %v1667, %v174
    %v1669 = vrot.slane %v174, 4
    %v1670 = vsel %vm311, %v302, %v1669
    %v1672 = vunpack.c.l.s4 1983009808
    %v1673 = vunpack.c.0.s8 %v1672
    %v1674 = vperm.slane %v1668, %v1673
    %v1676 = vunpack.c.l.s4 1983009808
    %v1677 = vunpack.c.0.s8 %v1676
    %v1678 = vperm.slane %v1670, %v1677
    %v1679 = vrot.slane %v1674, 4
    %v1680 = vsel %vm311, %v1679, %v1662
    %v1681 = vrot.slane %v1662, 4
    %v1682 = vsel %vm311, %v1674, %v1681
    %v1684 = vunpack.c.l.s4 1934713408
    %v1685 = vunpack.c.0.s8 %v1684
    %v1686 = vperm.slane %v1680, %v1685
    %v1688 = vunpack.c.l.s4 1934713408
    %v1689 = vunpack.c.0.s8 %v1688
    %v1690 = vperm.slane %v1682, %v1689
    %v1691 = vrot.slane %v1678, 4
    %v1692 = vsel %vm311, %v1691, %v1666
    %v1693 = vrot.slane %v1666, 4
    %v1694 = vsel %vm311, %v1678, %v1693
    %v1696 = vunpack.c.l.s4 1934713408
    %v1697 = vunpack.c.0.s8 %v1696
    %v1698 = vperm.slane %v1692, %v1697
    %v1700 = vunpack.c.l.s4 1934713408
    %v1701 = vunpack.c.0.s8 %v1700
    %v1702 = vperm.slane %v1694, %v1701
    %v1703 = vrot.slane %v1686, 4
    %v1704 = vsel %vm311, 0.0, %v1703
    %v1705 = vrot.slane %v1690, 4
    %v1706 = vsel %vm311, 0.0, %v1705
    %v1707 = vrot.slane %v1698, 4
    %v1708 = vsel %vm311, 0.0, %v1707
    %v1709 = vrot.slane %v1702, 4
    %v1710 = vsel %vm311, 0.0, %v1709
    %v1711 = vrot.slane %v239, 4
    %v1712 = vsel %vm311, %v1711, %v111
    %v1713 = vrot.slane %v111, 4
    %v1714 = vsel %vm311, %v239, %v1713
    %v1716 = vunpack.c.l.s4 1983009808
    %v1717 = vunpack.c.0.s8 %v1716
    %v1718 = vperm.slane %v1712, %v1717
    %v1720 = vunpack.c.l.s4 1983009808
    %v1721 = vunpack.c.0.s8 %v1720
    %v1722 = vperm.slane %v1714, %v1721
    %v1723 = vrot.slane %v303, 4
    %v1724 = vsel %vm311, %v1723, %v175
    %v1725 = vrot.slane %v175, 4
    %v1726 = vsel %vm311, %v303, %v1725
    %v1728 = vunpack.c.l.s4 1983009808
    %v1729 = vunpack.c.0.s8 %v1728
    %v1730 = vperm.slane %v1724, %v1729
    %v1732 = vunpack.c.l.s4 1983009808
    %v1733 = vunpack.c.0.s8 %v1732
    %v1734 = vperm.slane %v1726, %v1733
    %v1735 = vrot.slane %v1730, 4
    %v1736 = vsel %vm311, %v1735, %v1718
    %v1737 = vrot.slane %v1718, 4
    %v1738 = vsel %vm311, %v1730, %v1737
    %v1740 = vunpack.c.l.s4 1934713408
    %v1741 = vunpack.c.0.s8 %v1740
    %v1742 = vperm.slane %v1736, %v1741
    %v1744 = vunpack.c.l.s4 1934713408
    %v1745 = vunpack.c.0.s8 %v1744
    %v1746 = vperm.slane %v1738, %v1745
    %v1747 = vrot.slane %v1734, 4
    %v1748 = vsel %vm311, %v1747, %v1722
    %v1749 = vrot.slane %v1722, 4
    %v1750 = vsel %vm311, %v1734, %v1749
    %v1752 = vunpack.c.l.s4 1934713408
    %v1753 = vunpack.c.0.s8 %v1752
    %v1754 = vperm.slane %v1748, %v1753
    %v1756 = vunpack.c.l.s4 1934713408
    %v1757 = vunpack.c.0.s8 %v1756
    %v1758 = vperm.slane %v1750, %v1757
    %v1759 = vrot.slane %v1742, 4
    %v1760 = vsel %vm311, 0.0, %v1759
    %v1761 = vrot.slane %v1746, 4
    %v1762 = vsel %vm311, 0.0, %v1761
    %v1763 = vrot.slane %v1754, 4
    %v1764 = vsel %vm311, 0.0, %v1763
    %v1765 = vrot.slane %v1758, 4
    %v1766 = vsel %vm311, 0.0, %v1765
    %v1767 = vrot.slane %v240, 4
    %v1768 = vsel %vm311, %v1767, %v112
    %v1769 = vrot.slane %v112, 4
    %v1770 = vsel %vm311, %v240, %v1769
    %v1772 = vunpack.c.l.s4 1983009808
    %v1773 = vunpack.c.0.s8 %v1772
    %v1774 = vperm.slane %v1768, %v1773
    %v1776 = vunpack.c.l.s4 1983009808
    %v1777 = vunpack.c.0.s8 %v1776
    %v1778 = vperm.slane %v1770, %v1777
    %v1779 = vrot.slane %v304, 4
    %v1780 = vsel %vm311, %v1779, %v176
    %v1781 = vrot.slane %v176, 4
    %v1782 = vsel %vm311, %v304, %v1781
    %v1784 = vunpack.c.l.s4 1983009808
    %v1785 = vunpack.c.0.s8 %v1784
    %v1786 = vperm.slane %v1780, %v1785
    %v1788 = vunpack.c.l.s4 1983009808
    %v1789 = vunpack.c.0.s8 %v1788
    %v1790 = vperm.slane %v1782, %v1789
    %v1791 = vrot.slane %v1786, 4
    %v1792 = vsel %vm311, %v1791, %v1774
    %v1793 = vrot.slane %v1774, 4
    %v1794 = vsel %vm311, %v1786, %v1793
    %v1796 = vunpack.c.l.s4 1934713408
    %v1797 = vunpack.c.0.s8 %v1796
    %v1798 = vperm.slane %v1792, %v1797
    %v1800 = vunpack.c.l.s4 1934713408
    %v1801 = vunpack.c.0.s8 %v1800
    %v1802 = vperm.slane %v1794, %v1801
    %v1803 = vrot.slane %v1790, 4
    %v1804 = vsel %vm311, %v1803, %v1778
    %v1805 = vrot.slane %v1778, 4
    %v1806 = vsel %vm311, %v1790, %v1805
    %v1808 = vunpack.c.l.s4 1934713408
    %v1809 = vunpack.c.0.s8 %v1808
    %v1810 = vperm.slane %v1804, %v1809
    %v1812 = vunpack.c.l.s4 1934713408
    %v1813 = vunpack.c.0.s8 %v1812
    %v1814 = vperm.slane %v1806, %v1813
    %v1815 = vrot.slane %v1798, 4
    %v1816 = vsel %vm311, 0.0, %v1815
    %v1817 = vrot.slane %v1802, 4
    %v1818 = vsel %vm311, 0.0, %v1817
    %v1819 = vrot.slane %v1810, 4
    %v1820 = vsel %vm311, 0.0, %v1819
    %v1821 = vrot.slane %v1814, 4
    %v1822 = vsel %vm311, 0.0, %v1821
    %v1823 = vrot.slane %v241, 4
    %v1824 = vsel %vm311, %v1823, %v113
    %v1825 = vrot.slane %v113, 4
    %v1826 = vsel %vm311, %v241, %v1825
    %v1828 = vunpack.c.l.s4 1983009808
    %v1829 = vunpack.c.0.s8 %v1828
    %v1830 = vperm.slane %v1824, %v1829
    %v1832 = vunpack.c.l.s4 1983009808
    %v1833 = vunpack.c.0.s8 %v1832
    %v1834 = vperm.slane %v1826, %v1833
    %v1835 = vrot.slane %v305, 4
    %v1836 = vsel %vm311, %v1835, %v177
    %v1837 = vrot.slane %v177, 4
    %v1838 = vsel %vm311, %v305, %v1837
    %v1840 = vunpack.c.l.s4 1983009808
    %v1841 = vunpack.c.0.s8 %v1840
    %v1842 = vperm.slane %v1836, %v1841
    %v1844 = vunpack.c.l.s4 1983009808
    %v1845 = vunpack.c.0.s8 %v1844
    %v1846 = vperm.slane %v1838, %v1845
    %v1847 = vrot.slane %v1842, 4
    %v1848 = vsel %vm311, %v1847, %v1830
    %v1849 = vrot.slane %v1830, 4
    %v1850 = vsel %vm311, %v1842, %v1849
    %v1852 = vunpack.c.l.s4 1934713408
    %v1853 = vunpack.c.0.s8 %v1852
    %v1854 = vperm.slane %v1848, %v1853
    %v1856 = vunpack.c.l.s4 1934713408
    %v1857 = vunpack.c.0.s8 %v1856
    %v1858 = vperm.slane %v1850, %v1857
    %v1859 = vrot.slane %v1846, 4
    %v1860 = vsel %vm311, %v1859, %v1834
    %v1861 = vrot.slane %v1834, 4
    %v1862 = vsel %vm311, %v1846, %v1861
    %v1864 = vunpack.c.l.s4 1934713408
    %v1865 = vunpack.c.0.s8 %v1864
    %v1866 = vperm.slane %v1860, %v1865
    %v1868 = vunpack.c.l.s4 1934713408
    %v1869 = vunpack.c.0.s8 %v1868
    %v1870 = vperm.slane %v1862, %v1869
    %v1871 = vrot.slane %v1854, 4
    %v1872 = vsel %vm311, 0.0, %v1871
    %v1873 = vrot.slane %v1858, 4
    %v1874 = vsel %vm311, 0.0, %v1873
    %v1875 = vrot.slane %v1866, 4
    %v1876 = vsel %vm311, 0.0, %v1875
    %v1877 = vrot.slane %v1870, 4
    %v1878 = vsel %vm311, 0.0, %v1877
    %v1879 = vrot.slane %v242, 4
    %v1880 = vsel %vm311, %v1879, %v114
    %v1881 = vrot.slane %v114, 4
    %v1882 = vsel %vm311, %v242, %v1881
    %v1884 = vunpack.c.l.s4 1983009808
    %v1885 = vunpack.c.0.s8 %v1884
    %v1886 = vperm.slane %v1880, %v1885
    %v1888 = vunpack.c.l.s4 1983009808
    %v1889 = vunpack.c.0.s8 %v1888
    %v1890 = vperm.slane %v1882, %v1889
    %v1891 = vrot.slane %v306, 4
    %v1892 = vsel %vm311, %v1891, %v178
    %v1893 = vrot.slane %v178, 4
    %v1894 = vsel %vm311, %v306, %v1893
    %v1896 = vunpack.c.l.s4 1983009808
    %v1897 = vunpack.c.0.s8 %v1896
    %v1898 = vperm.slane %v1892, %v1897
    %v1900 = vunpack.c.l.s4 1983009808
    %v1901 = vunpack.c.0.s8 %v1900
    %v1902 = vperm.slane %v1894, %v1901
    %v1903 = vrot.slane %v1898, 4
    %v1904 = vsel %vm311, %v1903, %v1886
    %v1905 = vrot.slane %v1886, 4
    %v1906 = vsel %vm311, %v1898, %v1905
    %v1908 = vunpack.c.l.s4 1934713408
    %v1909 = vunpack.c.0.s8 %v1908
    %v1910 = vperm.slane %v1904, %v1909
    %v1912 = vunpack.c.l.s4 1934713408
    %v1913 = vunpack.c.0.s8 %v1912
    %v1914 = vperm.slane %v1906, %v1913
    %v1915 = vrot.slane %v1902, 4
    %v1916 = vsel %vm311, %v1915, %v1890
    %v1917 = vrot.slane %v1890, 4
    %v1918 = vsel %vm311, %v1902, %v1917
    %v1920 = vunpack.c.l.s4 1934713408
    %v1921 = vunpack.c.0.s8 %v1920
    %v1922 = vperm.slane %v1916, %v1921
    %v1924 = vunpack.c.l.s4 1934713408
    %v1925 = vunpack.c.0.s8 %v1924
    %v1926 = vperm.slane %v1918, %v1925
    %v1927 = vrot.slane %v1910, 4
    %v1928 = vsel %vm311, 0.0, %v1927
    %v1929 = vrot.slane %v1914, 4
    %v1930 = vsel %vm311, 0.0, %v1929
    %v1931 = vrot.slane %v1922, 4
    %v1932 = vsel %vm311, 0.0, %v1931
    %v1933 = vrot.slane %v1926, 4
    %v1934 = vsel %vm311, 0.0, %v1933
    %v1935 = vrot.slane %v243, 4
    %v1936 = vsel %vm311, %v1935, %v115
    %v1937 = vrot.slane %v115, 4
    %v1938 = vsel %vm311, %v243, %v1937
    %v1940 = vunpack.c.l.s4 1983009808
    %v1941 = vunpack.c.0.s8 %v1940
    %v1942 = vperm.slane %v1936, %v1941
    %v1944 = vunpack.c.l.s4 1983009808
    %v1945 = vunpack.c.0.s8 %v1944
    %v1946 = vperm.slane %v1938, %v1945
    %v1947 = vrot.slane %v307, 4
    %v1948 = vsel %vm311, %v1947, %v179
    %v1949 = vrot.slane %v179, 4
    %v1950 = vsel %vm311, %v307, %v1949
    %v1952 = vunpack.c.l.s4 1983009808
    %v1953 = vunpack.c.0.s8 %v1952
    %v1954 = vperm.slane %v1948, %v1953
    %v1956 = vunpack.c.l.s4 1983009808
    %v1957 = vunpack.c.0.s8 %v1956
    %v1958 = vperm.slane %v1950, %v1957
    %v1959 = vrot.slane %v1954, 4
    %v1960 = vsel %vm311, %v1959, %v1942
    %v1961 = vrot.slane %v1942, 4
    %v1962 = vsel %vm311, %v1954, %v1961
    %v1964 = vunpack.c.l.s4 1934713408
    %v1965 = vunpack.c.0.s8 %v1964
    %v1966 = vperm.slane %v1960, %v1965
    %v1968 = vunpack.c.l.s4 1934713408
    %v1969 = vunpack.c.0.s8 %v1968
    %v1970 = vperm.slane %v1962, %v1969
    %v1971 = vrot.slane %v1958, 4
    %v1972 = vsel %vm311, %v1971, %v1946
    %v1973 = vrot.slane %v1946, 4
    %v1974 = vsel %vm311, %v1958, %v1973
    %v1976 = vunpack.c.l.s4 1934713408
    %v1977 = vunpack.c.0.s8 %v1976
    %v1978 = vperm.slane %v1972, %v1977
    %v1980 = vunpack.c.l.s4 1934713408
    %v1981 = vunpack.c.0.s8 %v1980
    %v1982 = vperm.slane %v1974, %v1981
    %v1983 = vrot.slane %v1966, 4
    %v1984 = vsel %vm311, 0.0, %v1983
    %v1985 = vrot.slane %v1970, 4
    %v1986 = vsel %vm311, 0.0, %v1985
    %v1987 = vrot.slane %v1978, 4
    %v1988 = vsel %vm311, 0.0, %v1987
    %v1989 = vrot.slane %v1982, 4
    %v1990 = vsel %vm311, 0.0, %v1989
    %v1991 = vrot.slane %v244, 4
    %v1992 = vsel %vm311, %v1991, %v116
    %v1993 = vrot.slane %v116, 4
    %v1994 = vsel %vm311, %v244, %v1993
    %v1996 = vunpack.c.l.s4 1983009808
    %v1997 = vunpack.c.0.s8 %v1996
    %v1998 = vperm.slane %v1992, %v1997
    %v2000 = vunpack.c.l.s4 1983009808
    %v2001 = vunpack.c.0.s8 %v2000
    %v2002 = vperm.slane %v1994, %v2001
    %v2003 = vrot.slane %v308, 4
    %v2004 = vsel %vm311, %v2003, %v180
    %v2005 = vrot.slane %v180, 4
    %v2006 = vsel %vm311, %v308, %v2005
    %v2008 = vunpack.c.l.s4 1983009808
    %v2009 = vunpack.c.0.s8 %v2008
    %v2010 = vperm.slane %v2004, %v2009
    %v2012 = vunpack.c.l.s4 1983009808
    %v2013 = vunpack.c.0.s8 %v2012
    %v2014 = vperm.slane %v2006, %v2013
    %v2015 = vrot.slane %v2010, 4
    %v2016 = vsel %vm311, %v2015, %v1998
    %v2017 = vrot.slane %v1998, 4
    %v2018 = vsel %vm311, %v2010, %v2017
    %v2020 = vunpack.c.l.s4 1934713408
    %v2021 = vunpack.c.0.s8 %v2020
    %v2022 = vperm.slane %v2016, %v2021
    %v2024 = vunpack.c.l.s4 1934713408
    %v2025 = vunpack.c.0.s8 %v2024
    %v2026 = vperm.slane %v2018, %v2025
    %v2027 = vrot.slane %v2014, 4
    %v2028 = vsel %vm311, %v2027, %v2002
    %v2029 = vrot.slane %v2002, 4
    %v2030 = vsel %vm311, %v2014, %v2029
    %v2032 = vunpack.c.l.s4 1934713408
    %v2033 = vunpack.c.0.s8 %v2032
    %v2034 = vperm.slane %v2028, %v2033
    %v2036 = vunpack.c.l.s4 1934713408
    %v2037 = vunpack.c.0.s8 %v2036
    %v2038 = vperm.slane %v2030, %v2037
    %v2039 = vrot.slane %v2022, 4
    %v2040 = vsel %vm311, 0.0, %v2039
    %v2041 = vrot.slane %v2026, 4
    %v2042 = vsel %vm311, 0.0, %v2041
    %v2043 = vrot.slane %v2034, 4
    %v2044 = vsel %vm311, 0.0, %v2043
    %v2045 = vrot.slane %v2038, 4
    %v2046 = vsel %vm311, 0.0, %v2045
    %v2047 = vrot.slane %v245, 4
    %v2048 = vsel %vm311, %v2047, %v117
    %v2049 = vrot.slane %v117, 4
    %v2050 = vsel %vm311, %v245, %v2049
    %v2052 = vunpack.c.l.s4 1983009808
    %v2053 = vunpack.c.0.s8 %v2052
    %v2054 = vperm.slane %v2048, %v2053
    %v2056 = vunpack.c.l.s4 1983009808
    %v2057 = vunpack.c.0.s8 %v2056
    %v2058 = vperm.slane %v2050, %v2057
    %v2059 = vrot.slane %v309, 4
    %v2060 = vsel %vm311, %v2059, %v181
    %v2061 = vrot.slane %v181, 4
    %v2062 = vsel %vm311, %v309, %v2061
    %v2064 = vunpack.c.l.s4 1983009808
    %v2065 = vunpack.c.0.s8 %v2064
    %v2066 = vperm.slane %v2060, %v2065
    %v2068 = vunpack.c.l.s4 1983009808
    %v2069 = vunpack.c.0.s8 %v2068
    %v2070 = vperm.slane %v2062, %v2069
    %v2071 = vrot.slane %v2066, 4
    %v2072 = vsel %vm311, %v2071, %v2054
    %v2073 = vrot.slane %v2054, 4
    %v2074 = vsel %vm311, %v2066, %v2073
    %v2076 = vunpack.c.l.s4 1934713408
    %v2077 = vunpack.c.0.s8 %v2076
    %v2078 = vperm.slane %v2072, %v2077
    %v2080 = vunpack.c.l.s4 1934713408
    %v2081 = vunpack.c.0.s8 %v2080
    %v2082 = vperm.slane %v2074, %v2081
    %v2083 = vrot.slane %v2070, 4
    %v2084 = vsel %vm311, %v2083, %v2058
    %v2085 = vrot.slane %v2058, 4
    %v2086 = vsel %vm311, %v2070, %v2085
    %v2088 = vunpack.c.l.s4 1934713408
    %v2089 = vunpack.c.0.s8 %v2088
    %v2090 = vperm.slane %v2084, %v2089
    %v2092 = vunpack.c.l.s4 1934713408
    %v2093 = vunpack.c.0.s8 %v2092
    %v2094 = vperm.slane %v2086, %v2093
    %v2095 = vrot.slane %v2078, 4
    %v2096 = vsel %vm311, 0.0, %v2095
    %v2097 = vrot.slane %v2082, 4
    %v2098 = vsel %vm311, 0.0, %v2097
    %v2099 = vrot.slane %v2090, 4
    %v2100 = vsel %vm311, 0.0, %v2099
    %v2101 = vrot.slane %v2094, 4
    %v2102 = vsel %vm311, 0.0, %v2101
    %2104 = vrot.lane.b32.xlu0 %v360, 2
    %v2105 = vpop.permute.xlu0 %2104
    %2108 = vrot.lane.b32.xlu0 %v346, 4
    %v2109 = vpop.permute.xlu0 %2108
    %2112 = vrot.lane.b32.xlu0 %v362, 6
    %v2113 = vpop.permute.xlu0 %2112
    %2116 = vrot.lane.b32.xlu0 %v354, 8
    %v2117 = vpop.permute.xlu0 %2116
    %2120 = vrot.lane.b32.xlu0 %v364, 10
    %v2121 = vpop.permute.xlu0 %2120
    %2124 = vrot.lane.b32.xlu0 %v358, 12
    %v2125 = vpop.permute.xlu0 %2124
    %2128 = vrot.lane.b32.xlu0 %v366, 14
    %v2129 = vpop.permute.xlu0 %2128
    %2132 = vrot.lane.b32.xlu0 %v398, 16
    %v2133 = vpop.permute.xlu0 %2132
    %2136 = vrot.lane.b32.xlu0 %v416, 18
    %v2137 = vpop.permute.xlu0 %2136
    %2140 = vrot.lane.b32.xlu0 %v402, 20
    %v2141 = vpop.permute.xlu0 %2140
    %2144 = vrot.lane.b32.xlu0 %v418, 22
    %v2145 = vpop.permute.xlu0 %2144
    %2148 = vrot.lane.b32.xlu0 %v410, 24
    %v2149 = vpop.permute.xlu0 %2148
    %2152 = vrot.lane.b32.xlu0 %v420, 26
    %v2153 = vpop.permute.xlu0 %2152
    %2156 = vrot.lane.b32.xlu0 %v414, 28
    %v2157 = vpop.permute.xlu0 %2156
    %2160 = vrot.lane.b32.xlu0 %v422, 30
    %v2161 = vpop.permute.xlu0 %2160
    %2164 = vrot.lane.b32.xlu0 %v454, 32
    %v2165 = vpop.permute.xlu0 %2164
    %2168 = vrot.lane.b32.xlu0 %v472, 34
    %v2169 = vpop.permute.xlu0 %2168
    %2172 = vrot.lane.b32.xlu0 %v458, 36
    %v2173 = vpop.permute.xlu0 %2172
    %2176 = vrot.lane.b32.xlu0 %v474, 38
    %v2177 = vpop.permute.xlu0 %2176
    %2180 = vrot.lane.b32.xlu0 %v466, 40
    %v2181 = vpop.permute.xlu0 %2180
    %2184 = vrot.lane.b32.xlu0 %v476, 42
    %v2185 = vpop.permute.xlu0 %2184
    %2188 = vrot.lane.b32.xlu0 %v470, 44
    %v2189 = vpop.permute.xlu0 %2188
    %2192 = vrot.lane.b32.xlu0 %v478, 46
    %v2193 = vpop.permute.xlu0 %2192
    %2196 = vrot.lane.b32.xlu0 %v510, 48
    %v2197 = vpop.permute.xlu0 %2196
    %2200 = vrot.lane.b32.xlu0 %v528, 50
    %v2201 = vpop.permute.xlu0 %2200
    %2204 = vrot.lane.b32.xlu0 %v514, 52
    %v2205 = vpop.permute.xlu0 %2204
    %2208 = vrot.lane.b32.xlu0 %v530, 54
    %v2209 = vpop.permute.xlu0 %2208
    %2212 = vrot.lane.b32.xlu0 %v522, 56
    %v2213 = vpop.permute.xlu0 %2212
    %2216 = vrot.lane.b32.xlu0 %v532, 58
    %v2217 = vpop.permute.xlu0 %2216
    %2220 = vrot.lane.b32.xlu0 %v526, 60
    %v2221 = vpop.permute.xlu0 %2220
    %2224 = vrot.lane.b32.xlu0 %v534, 62
    %v2225 = vpop.permute.xlu0 %2224
    %2228 = vrot.lane.b32.xlu0 %v566, 64
    %v2229 = vpop.permute.xlu0 %2228
    %2232 = vrot.lane.b32.xlu0 %v584, 66
    %v2233 = vpop.permute.xlu0 %2232
    %2236 = vrot.lane.b32.xlu0 %v570, 68
    %v2237 = vpop.permute.xlu0 %2236
    %2240 = vrot.lane.b32.xlu0 %v586, 70
    %v2241 = vpop.permute.xlu0 %2240
    %2244 = vrot.lane.b32.xlu0 %v578, 72
    %v2245 = vpop.permute.xlu0 %2244
    %2248 = vrot.lane.b32.xlu0 %v588, 74
    %v2249 = vpop.permute.xlu0 %2248
    %2252 = vrot.lane.b32.xlu0 %v582, 76
    %v2253 = vpop.permute.xlu0 %2252
    %2256 = vrot.lane.b32.xlu0 %v590, 78
    %v2257 = vpop.permute.xlu0 %2256
    %2260 = vrot.lane.b32.xlu0 %v622, 80
    %v2261 = vpop.permute.xlu0 %2260
    %2264 = vrot.lane.b32.xlu0 %v640, 82
    %v2265 = vpop.permute.xlu0 %2264
    %2268 = vrot.lane.b32.xlu0 %v626, 84
    %v2269 = vpop.permute.xlu0 %2268
    %2272 = vrot.lane.b32.xlu0 %v642, 86
    %v2273 = vpop.permute.xlu0 %2272
    %2276 = vrot.lane.b32.xlu0 %v634, 88
    %v2277 = vpop.permute.xlu0 %2276
    %2280 = vrot.lane.b32.xlu0 %v644, 90
    %v2281 = vpop.permute.xlu0 %2280
    %2284 = vrot.lane.b32.xlu0 %v638, 92
    %v2285 = vpop.permute.xlu0 %2284
    %2288 = vrot.lane.b32.xlu0 %v646, 94
    %v2289 = vpop.permute.xlu0 %2288
    %2292 = vrot.lane.b32.xlu0 %v678, 96
    %v2293 = vpop.permute.xlu0 %2292
    %2296 = vrot.lane.b32.xlu0 %v696, 98
    %v2297 = vpop.permute.xlu0 %2296
    %2300 = vrot.lane.b32.xlu0 %v682, 100
    %v2301 = vpop.permute.xlu0 %2300
    %2304 = vrot.lane.b32.xlu0 %v698, 102
    %v2305 = vpop.permute.xlu0 %2304
    %2308 = vrot.lane.b32.xlu0 %v690, 104
    %v2309 = vpop.permute.xlu0 %2308
    %2312 = vrot.lane.b32.xlu0 %v700, 106
    %v2313 = vpop.permute.xlu0 %2312
    %2316 = vrot.lane.b32.xlu0 %v694, 108
    %v2317 = vpop.permute.xlu0 %2316
    %2320 = vrot.lane.b32.xlu0 %v702, 110
    %v2321 = vpop.permute.xlu0 %2320
    %2324 = vrot.lane.b32.xlu0 %v734, 112
    %v2325 = vpop.permute.xlu0 %2324
    %2328 = vrot.lane.b32.xlu0 %v752, 114
    %v2329 = vpop.permute.xlu0 %2328
    %2332 = vrot.lane.b32.xlu0 %v738, 116
    %v2333 = vpop.permute.xlu0 %2332
    %2336 = vrot.lane.b32.xlu0 %v754, 118
    %v2337 = vpop.permute.xlu0 %2336
    %2340 = vrot.lane.b32.xlu0 %v746, 120
    %v2341 = vpop.permute.xlu0 %2340
    %2344 = vrot.lane.b32.xlu0 %v756, 122
    %v2345 = vpop.permute.xlu0 %2344
    %2348 = vrot.lane.b32.xlu0 %v750, 124
    %v2349 = vpop.permute.xlu0 %2348
    %2352 = vrot.lane.b32.xlu0 %v758, 126
    %v2353 = vpop.permute.xlu0 %2352
    %2356 = vrot.lane.b32.xlu0 %v808, 2
    %v2357 = vpop.permute.xlu0 %2356
    %2360 = vrot.lane.b32.xlu0 %v794, 4
    %v2361 = vpop.permute.xlu0 %2360
    %2364 = vrot.lane.b32.xlu0 %v810, 6
    %v2365 = vpop.permute.xlu0 %2364
    %2368 = vrot.lane.b32.xlu0 %v802, 8
    %v2369 = vpop.permute.xlu0 %2368
    %2372 = vrot.lane.b32.xlu0 %v812, 10
    %v2373 = vpop.permute.xlu0 %2372
    %2376 = vrot.lane.b32.xlu0 %v806, 12
    %v2377 = vpop.permute.xlu0 %2376
    %2380 = vrot.lane.b32.xlu0 %v814, 14
    %v2381 = vpop.permute.xlu0 %2380
    %2384 = vrot.lane.b32.xlu0 %v846, 16
    %v2385 = vpop.permute.xlu0 %2384
    %2388 = vrot.lane.b32.xlu0 %v864, 18
    %v2389 = vpop.permute.xlu0 %2388
    %2392 = vrot.lane.b32.xlu0 %v850, 20
    %v2393 = vpop.permute.xlu0 %2392
    %2396 = vrot.lane.b32.xlu0 %v866, 22
    %v2397 = vpop.permute.xlu0 %2396
    %2400 = vrot.lane.b32.xlu0 %v858, 24
    %v2401 = vpop.permute.xlu0 %2400
    %2404 = vrot.lane.b32.xlu0 %v868, 26
    %v2405 = vpop.permute.xlu0 %2404
    %2408 = vrot.lane.b32.xlu0 %v862, 28
    %v2409 = vpop.permute.xlu0 %2408
    %2412 = vrot.lane.b32.xlu0 %v870, 30
    %v2413 = vpop.permute.xlu0 %2412
    %2416 = vrot.lane.b32.xlu0 %v902, 32
    %v2417 = vpop.permute.xlu0 %2416
    %2420 = vrot.lane.b32.xlu0 %v920, 34
    %v2421 = vpop.permute.xlu0 %2420
    %2424 = vrot.lane.b32.xlu0 %v906, 36
    %v2425 = vpop.permute.xlu0 %2424
    %2428 = vrot.lane.b32.xlu0 %v922, 38
    %v2429 = vpop.permute.xlu0 %2428
    %2432 = vrot.lane.b32.xlu0 %v914, 40
    %v2433 = vpop.permute.xlu0 %2432
    %2436 = vrot.lane.b32.xlu0 %v924, 42
    %v2437 = vpop.permute.xlu0 %2436
    %2440 = vrot.lane.b32.xlu0 %v918, 44
    %v2441 = vpop.permute.xlu0 %2440
    %2444 = vrot.lane.b32.xlu0 %v926, 46
    %v2445 = vpop.permute.xlu0 %2444
    %2448 = vrot.lane.b32.xlu0 %v958, 48
    %v2449 = vpop.permute.xlu0 %2448
    %2452 = vrot.lane.b32.xlu0 %v976, 50
    %v2453 = vpop.permute.xlu0 %2452
    %2456 = vrot.lane.b32.xlu0 %v962, 52
    %v2457 = vpop.permute.xlu0 %2456
    %2460 = vrot.lane.b32.xlu0 %v978, 54
    %v2461 = vpop.permute.xlu0 %2460
    %2464 = vrot.lane.b32.xlu0 %v970, 56
    %v2465 = vpop.permute.xlu0 %2464
    %2468 = vrot.lane.b32.xlu0 %v980, 58
    %v2469 = vpop.permute.xlu0 %2468
    %2472 = vrot.lane.b32.xlu0 %v974, 60
    %v2473 = vpop.permute.xlu0 %2472
    %2476 = vrot.lane.b32.xlu0 %v982, 62
    %v2477 = vpop.permute.xlu0 %2476
    %2480 = vrot.lane.b32.xlu0 %v1014, 64
    %v2481 = vpop.permute.xlu0 %2480
    %2484 = vrot.lane.b32.xlu0 %v1032, 66
    %v2485 = vpop.permute.xlu0 %2484
    %2488 = vrot.lane.b32.xlu0 %v1018, 68
    %v2489 = vpop.permute.xlu0 %2488
    %2492 = vrot.lane.b32.xlu0 %v1034, 70
    %v2493 = vpop.permute.xlu0 %2492
    %2496 = vrot.lane.b32.xlu0 %v1026, 72
    %v2497 = vpop.permute.xlu0 %2496
    %2500 = vrot.lane.b32.xlu0 %v1036, 74
    %v2501 = vpop.permute.xlu0 %2500
    %2504 = vrot.lane.b32.xlu0 %v1030, 76
    %v2505 = vpop.permute.xlu0 %2504
    %2508 = vrot.lane.b32.xlu0 %v1038, 78
    %v2509 = vpop.permute.xlu0 %2508
    %2512 = vrot.lane.b32.xlu0 %v1070, 80
    %v2513 = vpop.permute.xlu0 %2512
    %2516 = vrot.lane.b32.xlu0 %v1088, 82
    %v2517 = vpop.permute.xlu0 %2516
    %2520 = vrot.lane.b32.xlu0 %v1074, 84
    %v2521 = vpop.permute.xlu0 %2520
    %2524 = vrot.lane.b32.xlu0 %v1090, 86
    %v2525 = vpop.permute.xlu0 %2524
    %2528 = vrot.lane.b32.xlu0 %v1082, 88
    %v2529 = vpop.permute.xlu0 %2528
    %2532 = vrot.lane.b32.xlu0 %v1092, 90
    %v2533 = vpop.permute.xlu0 %2532
    %2536 = vrot.lane.b32.xlu0 %v1086, 92
    %v2537 = vpop.permute.xlu0 %2536
    %2540 = vrot.lane.b32.xlu0 %v1094, 94
    %v2541 = vpop.permute.xlu0 %2540
    %2544 = vrot.lane.b32.xlu0 %v1126, 96
    %v2545 = vpop.permute.xlu0 %2544
    %2548 = vrot.lane.b32.xlu0 %v1144, 98
    %v2549 = vpop.permute.xlu0 %2548
    %2552 = vrot.lane.b32.xlu0 %v1130, 100
    %v2553 = vpop.permute.xlu0 %2552
    %2556 = vrot.lane.b32.xlu0 %v1146, 102
    %v2557 = vpop.permute.xlu0 %2556
    %2560 = vrot.lane.b32.xlu0 %v1138, 104
    %v2561 = vpop.permute.xlu0 %2560
    %2564 = vrot.lane.b32.xlu0 %v1148, 106
    %v2565 = vpop.permute.xlu0 %2564
    %2568 = vrot.lane.b32.xlu0 %v1142, 108
    %v2569 = vpop.permute.xlu0 %2568
    %2572 = vrot.lane.b32.xlu0 %v1150, 110
    %v2573 = vpop.permute.xlu0 %2572
    %2576 = vrot.lane.b32.xlu0 %v1182, 112
    %v2577 = vpop.permute.xlu0 %2576
    %2580 = vrot.lane.b32.xlu0 %v1200, 114
    %v2581 = vpop.permute.xlu0 %2580
    %2584 = vrot.lane.b32.xlu0 %v1186, 116
    %v2585 = vpop.permute.xlu0 %2584
    %2588 = vrot.lane.b32.xlu0 %v1202, 118
    %v2589 = vpop.permute.xlu0 %2588
    %2592 = vrot.lane.b32.xlu0 %v1194, 120
    %v2593 = vpop.permute.xlu0 %2592
    %2596 = vrot.lane.b32.xlu0 %v1204, 122
    %v2597 = vpop.permute.xlu0 %2596
    %2600 = vrot.lane.b32.xlu0 %v1198, 124
    %v2601 = vpop.permute.xlu0 %2600
    %2604 = vrot.lane.b32.xlu0 %v1206, 126
    %v2605 = vpop.permute.xlu0 %2604
    %2608 = vrot.lane.b32.xlu0 %v1256, 2
    %v2609 = vpop.permute.xlu0 %2608
    %2612 = vrot.lane.b32.xlu0 %v1242, 4
    %v2613 = vpop.permute.xlu0 %2612
    %2616 = vrot.lane.b32.xlu0 %v1258, 6
    %v2617 = vpop.permute.xlu0 %2616
    %2620 = vrot.lane.b32.xlu0 %v1250, 8
    %v2621 = vpop.permute.xlu0 %2620
    %2624 = vrot.lane.b32.xlu0 %v1260, 10
    %v2625 = vpop.permute.xlu0 %2624
    %2628 = vrot.lane.b32.xlu0 %v1254, 12
    %v2629 = vpop.permute.xlu0 %2628
    %2632 = vrot.lane.b32.xlu0 %v1262, 14
    %v2633 = vpop.permute.xlu0 %2632
    %2636 = vrot.lane.b32.xlu0 %v1294, 16
    %v2637 = vpop.permute.xlu0 %2636
    %2640 = vrot.lane.b32.xlu0 %v1312, 18
    %v2641 = vpop.permute.xlu0 %2640
    %2644 = vrot.lane.b32.xlu0 %v1298, 20
    %v2645 = vpop.permute.xlu0 %2644
    %2648 = vrot.lane.b32.xlu0 %v1314, 22
    %v2649 = vpop.permute.xlu0 %2648
    %2652 = vrot.lane.b32.xlu0 %v1306, 24
    %v2653 = vpop.permute.xlu0 %2652
    %2656 = vrot.lane.b32.xlu0 %v1316, 26
    %v2657 = vpop.permute.xlu0 %2656
    %2660 = vrot.lane.b32.xlu0 %v1310, 28
    %v2661 = vpop.permute.xlu0 %2660
    %2664 = vrot.lane.b32.xlu0 %v1318, 30
    %v2665 = vpop.permute.xlu0 %2664
    %2668 = vrot.lane.b32.xlu0 %v1350, 32
    %v2669 = vpop.permute.xlu0 %2668
    %2672 = vrot.lane.b32.xlu0 %v1368, 34
    %v2673 = vpop.permute.xlu0 %2672
    %2676 = vrot.lane.b32.xlu0 %v1354, 36
    %v2677 = vpop.permute.xlu0 %2676
    %2680 = vrot.lane.b32.xlu0 %v1370, 38
    %v2681 = vpop.permute.xlu0 %2680
    %2684 = vrot.lane.b32.xlu0 %v1362, 40
    %v2685 = vpop.permute.xlu0 %2684
    %2688 = vrot.lane.b32.xlu0 %v1372, 42
    %v2689 = vpop.permute.xlu0 %2688
    %2692 = vrot.lane.b32.xlu0 %v1366, 44
    %v2693 = vpop.permute.xlu0 %2692
    %2696 = vrot.lane.b32.xlu0 %v1374, 46
    %v2697 = vpop.permute.xlu0 %2696
    %2700 = vrot.lane.b32.xlu0 %v1406, 48
    %v2701 = vpop.permute.xlu0 %2700
    %2704 = vrot.lane.b32.xlu0 %v1424, 50
    %v2705 = vpop.permute.xlu0 %2704
    %2708 = vrot.lane.b32.xlu0 %v1410, 52
    %v2709 = vpop.permute.xlu0 %2708
    %2712 = vrot.lane.b32.xlu0 %v1426, 54
    %v2713 = vpop.permute.xlu0 %2712
    %2716 = vrot.lane.b32.xlu0 %v1418, 56
    %v2717 = vpop.permute.xlu0 %2716
    %2720 = vrot.lane.b32.xlu0 %v1428, 58
    %v2721 = vpop.permute.xlu0 %2720
    %2724 = vrot.lane.b32.xlu0 %v1422, 60
    %v2725 = vpop.permute.xlu0 %2724
    %2728 = vrot.lane.b32.xlu0 %v1430, 62
    %v2729 = vpop.permute.xlu0 %2728
    %2732 = vrot.lane.b32.xlu0 %v1462, 64
    %v2733 = vpop.permute.xlu0 %2732
    %2736 = vrot.lane.b32.xlu0 %v1480, 66
    %v2737 = vpop.permute.xlu0 %2736
    %2740 = vrot.lane.b32.xlu0 %v1466, 68
    %v2741 = vpop.permute.xlu0 %2740
    %2744 = vrot.lane.b32.xlu0 %v1482, 70
    %v2745 = vpop.permute.xlu0 %2744
    %2748 = vrot.lane.b32.xlu0 %v1474, 72
    %v2749 = vpop.permute.xlu0 %2748
    %2752 = vrot.lane.b32.xlu0 %v1484, 74
    %v2753 = vpop.permute.xlu0 %2752
    %2756 = vrot.lane.b32.xlu0 %v1478, 76
    %v2757 = vpop.permute.xlu0 %2756
    %2760 = vrot.lane.b32.xlu0 %v1486, 78
    %v2761 = vpop.permute.xlu0 %2760
    %2764 = vrot.lane.b32.xlu0 %v1518, 80
    %v2765 = vpop.permute.xlu0 %2764
    %2768 = vrot.lane.b32.xlu0 %v1536, 82
    %v2769 = vpop.permute.xlu0 %2768
    %2772 = vrot.lane.b32.xlu0 %v1522, 84
    %v2773 = vpop.permute.xlu0 %2772
    %2776 = vrot.lane.b32.xlu0 %v1538, 86
    %v2777 = vpop.permute.xlu0 %2776
    %2780 = vrot.lane.b32.xlu0 %v1530, 88
    %v2781 = vpop.permute.xlu0 %2780
    %2784 = vrot.lane.b32.xlu0 %v1540, 90
    %v2785 = vpop.permute.xlu0 %2784
    %2788 = vrot.lane.b32.xlu0 %v1534, 92
    %v2789 = vpop.permute.xlu0 %2788
    %2792 = vrot.lane.b32.xlu0 %v1542, 94
    %v2793 = vpop.permute.xlu0 %2792
    %2796 = vrot.lane.b32.xlu0 %v1574, 96
    %v2797 = vpop.permute.xlu0 %2796
    %2800 = vrot.lane.b32.xlu0 %v1592, 98
    %v2801 = vpop.permute.xlu0 %2800
    %2804 = vrot.lane.b32.xlu0 %v1578, 100
    %v2805 = vpop.permute.xlu0 %2804
    %2808 = vrot.lane.b32.xlu0 %v1594, 102
    %v2809 = vpop.permute.xlu0 %2808
    %2812 = vrot.lane.b32.xlu0 %v1586, 104
    %v2813 = vpop.permute.xlu0 %2812
    %2816 = vrot.lane.b32.xlu0 %v1596, 106
    %v2817 = vpop.permute.xlu0 %2816
    %2820 = vrot.lane.b32.xlu0 %v1590, 108
    %v2821 = vpop.permute.xlu0 %2820
    %2824 = vrot.lane.b32.xlu0 %v1598, 110
    %v2825 = vpop.permute.xlu0 %2824
    %2828 = vrot.lane.b32.xlu0 %v1630, 112
    %v2829 = vpop.permute.xlu0 %2828
    %2832 = vrot.lane.b32.xlu0 %v1648, 114
    %v2833 = vpop.permute.xlu0 %2832
    %2836 = vrot.lane.b32.xlu0 %v1634, 116
    %v2837 = vpop.permute.xlu0 %2836
    %2840 = vrot.lane.b32.xlu0 %v1650, 118
    %v2841 = vpop.permute.xlu0 %2840
    %2844 = vrot.lane.b32.xlu0 %v1642, 120
    %v2845 = vpop.permute.xlu0 %2844
    %2848 = vrot.lane.b32.xlu0 %v1652, 122
    %v2849 = vpop.permute.xlu0 %2848
    %2852 = vrot.lane.b32.xlu0 %v1646, 124
    %v2853 = vpop.permute.xlu0 %2852
    %2856 = vrot.lane.b32.xlu0 %v1654, 126
    %v2857 = vpop.permute.xlu0 %2856
    %2860 = vrot.lane.b32.xlu0 %v1704, 2
    %v2861 = vpop.permute.xlu0 %2860
    %2864 = vrot.lane.b32.xlu0 %v1690, 4
    %v2865 = vpop.permute.xlu0 %2864
    %2868 = vrot.lane.b32.xlu0 %v1706, 6
    %v2869 = vpop.permute.xlu0 %2868
    %2872 = vrot.lane.b32.xlu0 %v1698, 8
    %v2873 = vpop.permute.xlu0 %2872
    %2876 = vrot.lane.b32.xlu0 %v1708, 10
    %v2877 = vpop.permute.xlu0 %2876
    %2880 = vrot.lane.b32.xlu0 %v1702, 12
    %v2881 = vpop.permute.xlu0 %2880
    %2884 = vrot.lane.b32.xlu0 %v1710, 14
    %v2885 = vpop.permute.xlu0 %2884
    %2888 = vrot.lane.b32.xlu0 %v1742, 16
    %v2889 = vpop.permute.xlu0 %2888
    %2892 = vrot.lane.b32.xlu0 %v1760, 18
    %v2893 = vpop.permute.xlu0 %2892
    %2896 = vrot.lane.b32.xlu0 %v1746, 20
    %v2897 = vpop.permute.xlu0 %2896
    %2900 = vrot.lane.b32.xlu0 %v1762, 22
    %v2901 = vpop.permute.xlu0 %2900
    %2904 = vrot.lane.b32.xlu0 %v1754, 24
    %v2905 = vpop.permute.xlu0 %2904
    %2908 = vrot.lane.b32.xlu0 %v1764, 26
    %v2909 = vpop.permute.xlu0 %2908
    %2912 = vrot.lane.b32.xlu0 %v1758, 28
    %v2913 = vpop.permute.xlu0 %2912
    %2916 = vrot.lane.b32.xlu0 %v1766, 30
    %v2917 = vpop.permute.xlu0 %2916
    %2920 = vrot.lane.b32.xlu0 %v1798, 32
    %v2921 = vpop.permute.xlu0 %2920
    %2924 = vrot.lane.b32.xlu0 %v1816, 34
    %v2925 = vpop.permute.xlu0 %2924
    %2928 = vrot.lane.b32.xlu0 %v1802, 36
    %v2929 = vpop.permute.xlu0 %2928
    %2932 = vrot.lane.b32.xlu0 %v1818, 38
    %v2933 = vpop.permute.xlu0 %2932
    %2936 = vrot.lane.b32.xlu0 %v1810, 40
    %v2937 = vpop.permute.xlu0 %2936
    %2940 = vrot.lane.b32.xlu0 %v1820, 42
    %v2941 = vpop.permute.xlu0 %2940
    %2944 = vrot.lane.b32.xlu0 %v1814, 44
    %v2945 = vpop.permute.xlu0 %2944
    %2948 = vrot.lane.b32.xlu0 %v1822, 46
    %v2949 = vpop.permute.xlu0 %2948
    %2952 = vrot.lane.b32.xlu0 %v1854, 48
    %v2953 = vpop.permute.xlu0 %2952
    %2956 = vrot.lane.b32.xlu0 %v1872, 50
    %v2957 = vpop.permute.xlu0 %2956
    %2960 = vrot.lane.b32.xlu0 %v1858, 52
    %v2961 = vpop.permute.xlu0 %2960
    %2964 = vrot.lane.b32.xlu0 %v1874, 54
    %v2965 = vpop.permute.xlu0 %2964
    %2968 = vrot.lane.b32.xlu0 %v1866, 56
    %v2969 = vpop.permute.xlu0 %2968
    %2972 = vrot.lane.b32.xlu0 %v1876, 58
    %v2973 = vpop.permute.xlu0 %2972
    %2976 = vrot.lane.b32.xlu0 %v1870, 60
    %v2977 = vpop.permute.xlu0 %2976
    %2980 = vrot.lane.b32.xlu0 %v1878, 62
    %v2981 = vpop.permute.xlu0 %2980
    %2984 = vrot.lane.b32.xlu0 %v1910, 64
    %v2985 = vpop.permute.xlu0 %2984
    %2988 = vrot.lane.b32.xlu0 %v1928, 66
    %v2989 = vpop.permute.xlu0 %2988
    %2992 = vrot.lane.b32.xlu0 %v1914, 68
    %v2993 = vpop.permute.xlu0 %2992
    %2996 = vrot.lane.b32.xlu0 %v1930, 70
    %v2997 = vpop.permute.xlu0 %2996
    %3000 = vrot.lane.b32.xlu0 %v1922, 72
    %v3001 = vpop.permute.xlu0 %3000
    %3004 = vrot.lane.b32.xlu0 %v1932, 74
    %v3005 = vpop.permute.xlu0 %3004
    %3008 = vrot.lane.b32.xlu0 %v1926, 76
    %v3009 = vpop.permute.xlu0 %3008
    %3012 = vrot.lane.b32.xlu0 %v1934, 78
    %v3013 = vpop.permute.xlu0 %3012
    %3016 = vrot.lane.b32.xlu0 %v1966, 80
    %v3017 = vpop.permute.xlu0 %3016
    %3020 = vrot.lane.b32.xlu0 %v1984, 82
    %v3021 = vpop.permute.xlu0 %3020
    %3024 = vrot.lane.b32.xlu0 %v1970, 84
    %v3025 = vpop.permute.xlu0 %3024
    %3028 = vrot.lane.b32.xlu0 %v1986, 86
    %v3029 = vpop.permute.xlu0 %3028
    %3032 = vrot.lane.b32.xlu0 %v1978, 88
    %v3033 = vpop.permute.xlu0 %3032
    %3036 = vrot.lane.b32.xlu0 %v1988, 90
    %v3037 = vpop.permute.xlu0 %3036
    %3040 = vrot.lane.b32.xlu0 %v1982, 92
    %v3041 = vpop.permute.xlu0 %3040
    %3044 = vrot.lane.b32.xlu0 %v1990, 94
    %v3045 = vpop.permute.xlu0 %3044
    %3048 = vrot.lane.b32.xlu0 %v2022, 96
    %v3049 = vpop.permute.xlu0 %3048
    %3052 = vrot.lane.b32.xlu0 %v2040, 98
    %v3053 = vpop.permute.xlu0 %3052
    %3056 = vrot.lane.b32.xlu0 %v2026, 100
    %v3057 = vpop.permute.xlu0 %3056
    %3060 = vrot.lane.b32.xlu0 %v2042, 102
    %v3061 = vpop.permute.xlu0 %3060
    %3064 = vrot.lane.b32.xlu0 %v2034, 104
    %v3065 = vpop.permute.xlu0 %3064
    %3068 = vrot.lane.b32.xlu0 %v2044, 106
    %v3069 = vpop.permute.xlu0 %3068
    %3072 = vrot.lane.b32.xlu0 %v2038, 108
    %v3073 = vpop.permute.xlu0 %3072
    %3076 = vrot.lane.b32.xlu0 %v2046, 110
    %v3077 = vpop.permute.xlu0 %3076
    %3080 = vrot.lane.b32.xlu0 %v2078, 112
    %v3081 = vpop.permute.xlu0 %3080
    %3084 = vrot.lane.b32.xlu0 %v2096, 114
    %v3085 = vpop.permute.xlu0 %3084
    %3088 = vrot.lane.b32.xlu0 %v2082, 116
    %v3089 = vpop.permute.xlu0 %3088
    %3092 = vrot.lane.b32.xlu0 %v2098, 118
    %v3093 = vpop.permute.xlu0 %3092
    %3096 = vrot.lane.b32.xlu0 %v2090, 120
    %v3097 = vpop.permute.xlu0 %3096
    %3100 = vrot.lane.b32.xlu0 %v2100, 122
    %v3101 = vpop.permute.xlu0 %3100
    %3104 = vrot.lane.b32.xlu0 %v2094, 124
    %v3105 = vpop.permute.xlu0 %3104
    %3108 = vrot.lane.b32.xlu0 %v2102, 126
    %v3109 = vpop.permute.xlu0 %3108
    %vm3111 = vcmask 15360
    %v3112 = vsel %vm3111, %v342, %v2105
    %vm3113 = vcmask 31744
    %v3114 = vsel %vm3113, %v3112, %v2109
    %vm3115 = vcmask 48128
    %v3116 = vsel %vm3115, %v3114, %v2113
    %vm3117 = vcmask 64512
    %v3118 = vsel %vm3117, %v3116, %v2117
    %vm3119 = vcmask 80896
    %v3120 = vsel %vm3119, %v3118, %v2121
    %vm3121 = vcmask 97280
    %v3122 = vsel %vm3121, %v3120, %v2125
    %vm3123 = vcmask 113664
    %v3124 = vsel %vm3123, %v3122, %v2129
    %vm3125 = vcmask 130048
    %v3126 = vsel %vm3125, %v3124, %v2133
    %vm3127 = vcmask 146432
    %v3128 = vsel %vm3127, %v3126, %v2137
    %vm3129 = vcmask 162816
    %v3130 = vsel %vm3129, %v3128, %v2141
    %vm3131 = vcmask 179200
    %v3132 = vsel %vm3131, %v3130, %v2145
    %vm3133 = vcmask 195584
    %v3134 = vsel %vm3133, %v3132, %v2149
    %vm3135 = vcmask 211968
    %v3136 = vsel %vm3135, %v3134, %v2153
    %vm3137 = vcmask 228352
    %v3138 = vsel %vm3137, %v3136, %v2157
    %vm3139 = vcmask 244736
    %v3140 = vsel %vm3139, %v3138, %v2161
    %vm3141 = vcmask 261120
    %v3142 = vsel %vm3141, %v3140, %v2165
    %vm3143 = vcmask 277504
    %v3144 = vsel %vm3143, %v3142, %v2169
    %vm3145 = vcmask 293888
    %v3146 = vsel %vm3145, %v3144, %v2173
    %vm3147 = vcmask 310272
    %v3148 = vsel %vm3147, %v3146, %v2177
    %vm3149 = vcmask 326656
    %v3150 = vsel %vm3149, %v3148, %v2181
    %vm3151 = vcmask 343040
    %v3152 = vsel %vm3151, %v3150, %v2185
    %vm3153 = vcmask 359424
    %v3154 = vsel %vm3153, %v3152, %v2189
    %vm3155 = vcmask 375808
    %v3156 = vsel %vm3155, %v3154, %v2193
    %vm3157 = vcmask 392192
    %v3158 = vsel %vm3157, %v3156, %v2197
    %vm3159 = vcmask 408576
    %v3160 = vsel %vm3159, %v3158, %v2201
    %vm3161 = vcmask 424960
    %v3162 = vsel %vm3161, %v3160, %v2205
    %vm3163 = vcmask 441344
    %v3164 = vsel %vm3163, %v3162, %v2209
    %vm3165 = vcmask 457728
    %v3166 = vsel %vm3165, %v3164, %v2213
    %vm3167 = vcmask 474112
    %v3168 = vsel %vm3167, %v3166, %v2217
    %vm3169 = vcmask 490496
    %v3170 = vsel %vm3169, %v3168, %v2221
    %vm3171 = vcmask 506880
    %v3172 = vsel %vm3171, %v3170, %v2225
    %vm3173 = vcmask 523264
    %v3174 = vsel %vm3173, %v3172, %v2229
    %vm3175 = vcmask 539648
    %v3176 = vsel %vm3175, %v3174, %v2233
    %vm3177 = vcmask 556032
    %v3178 = vsel %vm3177, %v3176, %v2237
    %vm3179 = vcmask 572416
    %v3180 = vsel %vm3179, %v3178, %v2241
    %vm3181 = vcmask 588800
    %v3182 = vsel %vm3181, %v3180, %v2245
    %vm3183 = vcmask 605184
    %v3184 = vsel %vm3183, %v3182, %v2249
    %vm3185 = vcmask 621568
    %v3186 = vsel %vm3185, %v3184, %v2253
    %vm3187 = vcmask 637952
    %v3188 = vsel %vm3187, %v3186, %v2257
    %vm3189 = vcmask 654336
    %v3190 = vsel %vm3189, %v3188, %v2261
    %vm3191 = vcmask 670720
    %v3192 = vsel %vm3191, %v3190, %v2265
    %vm3193 = vcmask 687104
    %v3194 = vsel %vm3193, %v3192, %v2269
    %vm3195 = vcmask 703488
    %v3196 = vsel %vm3195, %v3194, %v2273
    %vm3197 = vcmask 719872
    %v3198 = vsel %vm3197, %v3196, %v2277
    %vm3199 = vcmask 736256
    %v3200 = vsel %vm3199, %v3198, %v2281
    %vm3201 = vcmask 752640
    %v3202 = vsel %vm3201, %v3200, %v2285
    %vm3203 = vcmask 769024
    %v3204 = vsel %vm3203, %v3202, %v2289
    %vm3205 = vcmask 785408
    %v3206 = vsel %vm3205, %v3204, %v2293
    %vm3207 = vcmask 801792
    %v3208 = vsel %vm3207, %v3206, %v2297
    %vm3209 = vcmask 818176
    %v3210 = vsel %vm3209, %v3208, %v2301
    %vm3211 = vcmask 834560
    %v3212 = vsel %vm3211, %v3210, %v2305
    %vm3213 = vcmask 850944
    %v3214 = vsel %vm3213, %v3212, %v2309
    %vm3215 = vcmask 867328
    %v3216 = vsel %vm3215, %v3214, %v2313
    %vm3217 = vcmask 883712
    %v3218 = vsel %vm3217, %v3216, %v2317
    %vm3219 = vcmask 900096
    %v3220 = vsel %vm3219, %v3218, %v2321
    %vm3221 = vcmask 916480
    %v3222 = vsel %vm3221, %v3220, %v2325
    %vm3223 = vcmask 932864
    %v3224 = vsel %vm3223, %v3222, %v2329
    %vm3225 = vcmask 949248
    %v3226 = vsel %vm3225, %v3224, %v2333
    %vm3227 = vcmask 965632
    %v3228 = vsel %vm3227, %v3226, %v2337
    %vm3229 = vcmask 982016
    %v3230 = vsel %vm3229, %v3228, %v2341
    %vm3231 = vcmask 998400
    %v3232 = vsel %vm3231, %v3230, %v2345
    %vm3233 = vcmask 1014784
    %v3234 = vsel %vm3233, %v3232, %v2349
    %vm3235 = vcmask 1031168
    %v3236 = vsel %vm3235, %v3234, %v2353
    %v3237 = vsel %vm3111, %v790, %v2357
    %v3238 = vsel %vm3113, %v3237, %v2361
    %v3239 = vsel %vm3115, %v3238, %v2365
    %v3240 = vsel %vm3117, %v3239, %v2369
    %v3241 = vsel %vm3119, %v3240, %v2373
    %v3242 = vsel %vm3121, %v3241, %v2377
    %v3243 = vsel %vm3123, %v3242, %v2381
    %v3244 = vsel %vm3125, %v3243, %v2385
    %v3245 = vsel %vm3127, %v3244, %v2389
    %v3246 = vsel %vm3129, %v3245, %v2393
    %v3247 = vsel %vm3131, %v3246, %v2397
    %v3248 = vsel %vm3133, %v3247, %v2401
    %v3249 = vsel %vm3135, %v3248, %v2405
    %v3250 = vsel %vm3137, %v3249, %v2409
    %v3251 = vsel %vm3139, %v3250, %v2413
    %v3252 = vsel %vm3141, %v3251, %v2417
    %v3253 = vsel %vm3143, %v3252, %v2421
    %v3254 = vsel %vm3145, %v3253, %v2425
    %v3255 = vsel %vm3147, %v3254, %v2429
    %v3256 = vsel %vm3149, %v3255, %v2433
    %v3257 = vsel %vm3151, %v3256, %v2437
    %v3258 = vsel %vm3153, %v3257, %v2441
    %v3259 = vsel %vm3155, %v3258, %v2445
    %v3260 = vsel %vm3157, %v3259, %v2449
    %v3261 = vsel %vm3159, %v3260, %v2453
    %v3262 = vsel %vm3161, %v3261, %v2457
    %v3263 = vsel %vm3163, %v3262, %v2461
    %v3264 = vsel %vm3165, %v3263, %v2465
    %v3265 = vsel %vm3167, %v3264, %v2469
    %v3266 = vsel %vm3169, %v3265, %v2473
    %v3267 = vsel %vm3171, %v3266, %v2477
    %v3268 = vsel %vm3173, %v3267, %v2481
    %v3269 = vsel %vm3175, %v3268, %v2485
    %v3270 = vsel %vm3177, %v3269, %v2489
    %v3271 = vsel %vm3179, %v3270, %v2493
    %v3272 = vsel %vm3181, %v3271, %v2497
    %v3273 = vsel %vm3183, %v3272, %v2501
    %v3274 = vsel %vm3185, %v3273, %v2505
    %v3275 = vsel %vm3187, %v3274, %v2509
    %v3276 = vsel %vm3189, %v3275, %v2513
    %v3277 = vsel %vm3191, %v3276, %v2517
    %v3278 = vsel %vm3193, %v3277, %v2521
    %v3279 = vsel %vm3195, %v3278, %v2525
    %v3280 = vsel %vm3197, %v3279, %v2529
    %v3281 = vsel %vm3199, %v3280, %v2533
    %v3282 = vsel %vm3201, %v3281, %v2537
    %v3283 = vsel %vm3203, %v3282, %v2541
    %v3284 = vsel %vm3205, %v3283, %v2545
    %v3285 = vsel %vm3207, %v3284, %v2549
    %v3286 = vsel %vm3209, %v3285, %v2553
    %v3287 = vsel %vm3211, %v3286, %v2557
    %v3288 = vsel %vm3213, %v3287, %v2561
    %v3289 = vsel %vm3215, %v3288, %v2565
    %v3290 = vsel %vm3217, %v3289, %v2569
    %v3291 = vsel %vm3219, %v3290, %v2573
    %v3292 = vsel %vm3221, %v3291, %v2577
    %v3293 = vsel %vm3223, %v3292, %v2581
    %v3294 = vsel %vm3225, %v3293, %v2585
    %v3295 = vsel %vm3227, %v3294, %v2589
    %v3296 = vsel %vm3229, %v3295, %v2593
    %v3297 = vsel %vm3231, %v3296, %v2597
    %v3298 = vsel %vm3233, %v3297, %v2601
    %v3299 = vsel %vm3235, %v3298, %v2605
    %v3300 = vsel %vm3111, %v1238, %v2609
    %v3301 = vsel %vm3113, %v3300, %v2613
    %v3302 = vsel %vm3115, %v3301, %v2617
    %v3303 = vsel %vm3117, %v3302, %v2621
    %v3304 = vsel %vm3119, %v3303, %v2625
    %v3305 = vsel %vm3121, %v3304, %v2629
    %v3306 = vsel %vm3123, %v3305, %v2633
    %v3307 = vsel %vm3125, %v3306, %v2637
    %v3308 = vsel %vm3127, %v3307, %v2641
    %v3309 = vsel %vm3129, %v3308, %v2645
    %v3310 = vsel %vm3131, %v3309, %v2649
    %v3311 = vsel %vm3133, %v3310, %v2653
    %v3312 = vsel %vm3135, %v3311, %v2657
    %v3313 = vsel %vm3137, %v3312, %v2661
    %v3314 = vsel %vm3139, %v3313, %v2665
    %v3315 = vsel %vm3141, %v3314, %v2669
    %v3316 = vsel %vm3143, %v3315, %v2673
    %v3317 = vsel %vm3145, %v3316, %v2677
    %v3318 = vsel %vm3147, %v3317, %v2681
    %v3319 = vsel %vm3149, %v3318, %v2685
    %v3320 = vsel %vm3151, %v3319, %v2689
    %v3321 = vsel %vm3153, %v3320, %v2693
    %v3322 = vsel %vm3155, %v3321, %v2697
    %v3323 = vsel %vm3157, %v3322, %v2701
    %v3324 = vsel %vm3159, %v3323, %v2705
    %v3325 = vsel %vm3161, %v3324, %v2709
    %v3326 = vsel %vm3163, %v3325, %v2713
    %v3327 = vsel %vm3165, %v3326, %v2717
    %v3328 = vsel %vm3167, %v3327, %v2721
    %v3329 = vsel %vm3169, %v3328, %v2725
    %v3330 = vsel %vm3171, %v3329, %v2729
    %v3331 = vsel %vm3173, %v3330, %v2733
    %v3332 = vsel %vm3175, %v3331, %v2737
    %v3333 = vsel %vm3177, %v3332, %v2741
    %v3334 = vsel %vm3179, %v3333, %v2745
    %v3335 = vsel %vm3181, %v3334, %v2749
    %v3336 = vsel %vm3183, %v3335, %v2753
    %v3337 = vsel %vm3185, %v3336, %v2757
    %v3338 = vsel %vm3187, %v3337, %v2761
    %v3339 = vsel %vm3189, %v3338, %v2765
    %v3340 = vsel %vm3191, %v3339, %v2769
    %v3341 = vsel %vm3193, %v3340, %v2773
    %v3342 = vsel %vm3195, %v3341, %v2777
    %v3343 = vsel %vm3197, %v3342, %v2781
    %v3344 = vsel %vm3199, %v3343, %v2785
    %v3345 = vsel %vm3201, %v3344, %v2789
    %v3346 = vsel %vm3203, %v3345, %v2793
    %v3347 = vsel %vm3205, %v3346, %v2797
    %v3348 = vsel %vm3207, %v3347, %v2801
    %v3349 = vsel %vm3209, %v3348, %v2805
    %v3350 = vsel %vm3211, %v3349, %v2809
    %v3351 = vsel %vm3213, %v3350, %v2813
    %v3352 = vsel %vm3215, %v3351, %v2817
    %v3353 = vsel %vm3217, %v3352, %v2821
    %v3354 = vsel %vm3219, %v3353, %v2825
    %v3355 = vsel %vm3221, %v3354, %v2829
    %v3356 = vsel %vm3223, %v3355, %v2833
    %v3357 = vsel %vm3225, %v3356, %v2837
    %v3358 = vsel %vm3227, %v3357, %v2841
    %v3359 = vsel %vm3229, %v3358, %v2845
    %v3360 = vsel %vm3231, %v3359, %v2849
    %v3361 = vsel %vm3233, %v3360, %v2853
    %v3362 = vsel %vm3235, %v3361, %v2857
    %v3363 = vsel %vm3111, %v1686, %v2861
    %v3364 = vsel %vm3113, %v3363, %v2865
    %v3365 = vsel %vm3115, %v3364, %v2869
    %v3366 = vsel %vm3117, %v3365, %v2873
    %v3367 = vsel %vm3119, %v3366, %v2877
    %v3368 = vsel %vm3121, %v3367, %v2881
    %v3369 = vsel %vm3123, %v3368, %v2885
    %v3370 = vsel %vm3125, %v3369, %v2889
    %v3371 = vsel %vm3127, %v3370, %v2893
    %v3372 = vsel %vm3129, %v3371, %v2897
    %v3373 = vsel %vm3131, %v3372, %v2901
    %v3374 = vsel %vm3133, %v3373, %v2905
    %v3375 = vsel %vm3135, %v3374, %v2909
    %v3376 = vsel %vm3137, %v3375, %v2913
    %v3377 = vsel %vm3139, %v3376, %v2917
    %v3378 = vsel %vm3141, %v3377, %v2921
    %v3379 = vsel %vm3143, %v3378, %v2925
    %v3380 = vsel %vm3145, %v3379, %v2929
    %v3381 = vsel %vm3147, %v3380, %v2933
    %v3382 = vsel %vm3149, %v3381, %v2937
    %v3383 = vsel %vm3151, %v3382, %v2941
    %v3384 = vsel %vm3153, %v3383, %v2945
    %v3385 = vsel %vm3155, %v3384, %v2949
    %v3386 = vsel %vm3157, %v3385, %v2953
    %v3387 = vsel %vm3159, %v3386, %v2957
    %v3388 = vsel %vm3161, %v3387, %v2961
    %v3389 = vsel %vm3163, %v3388, %v2965
    %v3390 = vsel %vm3165, %v3389, %v2969
    %v3391 = vsel %vm3167, %v3390, %v2973
    %v3392 = vsel %vm3169, %v3391, %v2977
    %v3393 = vsel %vm3171, %v3392, %v2981
    %v3394 = vsel %vm3173, %v3393, %v2985
    %v3395 = vsel %vm3175, %v3394, %v2989
    %v3396 = vsel %vm3177, %v3395, %v2993
    %v3397 = vsel %vm3179, %v3396, %v2997
    %v3398 = vsel %vm3181, %v3397, %v3001
    %v3399 = vsel %vm3183, %v3398, %v3005
    %v3400 = vsel %vm3185, %v3399, %v3009
    %v3401 = vsel %vm3187, %v3400, %v3013
    %v3402 = vsel %vm3189, %v3401, %v3017
    %v3403 = vsel %vm3191, %v3402, %v3021
    %v3404 = vsel %vm3193, %v3403, %v3025
    %v3405 = vsel %vm3195, %v3404, %v3029
    %v3406 = vsel %vm3197, %v3405, %v3033
    %v3407 = vsel %vm3199, %v3406, %v3037
    %v3408 = vsel %vm3201, %v3407, %v3041
    %v3409 = vsel %vm3203, %v3408, %v3045
    %v3410 = vsel %vm3205, %v3409, %v3049
    %v3411 = vsel %vm3207, %v3410, %v3053
    %v3412 = vsel %vm3209, %v3411, %v3057
    %v3413 = vsel %vm3211, %v3412, %v3061
    %v3414 = vsel %vm3213, %v3413, %v3065
    %v3415 = vsel %vm3215, %v3414, %v3069
    %v3416 = vsel %vm3217, %v3415, %v3073
    %v3417 = vsel %vm3219, %v3416, %v3077
    %v3418 = vsel %vm3221, %v3417, %v3081
    %v3419 = vsel %vm3223, %v3418, %v3085
    %v3420 = vsel %vm3225, %v3419, %v3089
    %v3421 = vsel %vm3227, %v3420, %v3093
    %v3422 = vsel %vm3229, %v3421, %v3097
    %v3423 = vsel %vm3231, %v3422, %v3101
    %v3424 = vsel %vm3233, %v3423, %v3105
    %v3425 = vsel %vm3235, %v3424, %v3109
    %v3430 = vrot.slane %v3299, 4
    %v3431 = vrot.slane %v3425, 4
    %vm3432 = vcmask 1043456
    %v3433 = vsel %vm3432, %v3236, %v3430
    %v3434 = vsel %vm3432, %v3362, %v3431
    %3437 = vst [vmem:[#allocation5] sm:$0xff] %v3433
    %3438 = vst [vmem:[#allocation5 + $0x8] sm:$0xff] %v3434
    // Predicated region
    $region10: #{tpu_custom_call.1} parent=1 // pred_check
      _
    $region11: #{tpu_custom_call.1} parent=1 // pred_check_branch
      %3440 = sbr.rel (0) target = $region13
    $region12: #{tpu_custom_call.1} parent=1 // pred_region
      %3442 = vsyncadd [#allocation4], 0
      %s3444 = sshll.u32 [#allocation5], 4
      %s3445 = int_to_ptr.vmem [resolvable:$true] %s3444
      %s3446 = sshll.u32 %s1, 4
      %s3447 = int_to_ptr.hbm [resolvable:$true] %s3446
      %3449 = dma.vmem_to_hbm [thread:$0]  %s3445, 256, %s3447, [#allocation4]
    $region13: #{tpu_custom_call.1} parent=1 // pred_fallthru
      _
    // Predicated region
    $region14: #{tpu_custom_call.1} parent=1 // pred_check
      _
    $region15: #{tpu_custom_call.1} parent=1 // pred_check_branch
      %3451 = sbr.rel (0) target = $region17
    $region16: #{tpu_custom_call.1} parent=1 // pred_region
      %3453 = dma.done [#allocation4], 256
    $region17: #{tpu_custom_call.1} parent=1 // pred_fallthru
      _
    %3454 = vsyncpa [#allocation3], 1
    %3455 = vsyncpa [#allocation4], 1

</llo_original>
